<compile_context>
chip_gen: v6e
topology: v6e:2x2x1
jax: 0.10.0
libtpu: 0.0.40
codegen_flags: <defaults>
</compile_context>

<pallas_src>
import functools

import jax
import jax.numpy as jnp
from jax.experimental import pallas as pl
from jax.experimental.pallas import tpu as pltpu


def _attention_kernel(x_ref, wqkv_ref, wout_ref, bout_ref, o_ref, *,
                      heads, dim_head, scale):
    # x_ref:    (1, n, dim)       -> one batch element
    # wqkv_ref: (dim, 3*inner)    -> resident
    # wout_ref: (inner, d_pad)    -> resident (lane-padded)
    # bout_ref: (1, d_pad)
    # o_ref:    (1, n, d_pad)
    inner = heads * dim_head
    x = x_ref[0]                                                     # (n, dim)

    # Fused QKV projection on the MXU.
    qkv = jnp.dot(x, wqkv_ref[...], preferred_element_type=jnp.float32)  # (n, 3*inner)
    q = qkv[:, 0 * inner:1 * inner]                                  # (n, inner)
    k = qkv[:, 1 * inner:2 * inner]
    v = qkv[:, 2 * inner:3 * inner]

    # Per-head attention (static, unrolled loop; head slices are lane slices).
    outs = []
    for h in range(heads):
        sl = slice(h * dim_head, (h + 1) * dim_head)
        qh = q[:, sl]                                                # (n, d)
        kh = k[:, sl]
        vh = v[:, sl]
        # q @ k^T, contracting the head dim (avoids a materialized transpose).
        sim = jax.lax.dot_general(
            qh, kh, (((1,), (1,)), ((), ())),
            preferred_element_type=jnp.float32) * scale              # (n, n)
        # Numerically stable softmax over the key axis.
        sim = sim - jnp.max(sim, axis=-1, keepdims=True)
        p = jnp.exp(sim)
        attn = p / jnp.sum(p, axis=-1, keepdims=True)
        outs.append(jnp.dot(attn, vh, preferred_element_type=jnp.float32))  # (n, d)

    out = jnp.concatenate(outs, axis=-1)                             # (n, inner) lane-dense

    # Output projection (+ bias), lane-padded to d_pad.
    y = jnp.dot(out, wout_ref[...], preferred_element_type=jnp.float32) + bout_ref[...]
    o_ref[0] = y.astype(o_ref.dtype)


def attention_pallas(x, w_qkv, w_out, b_out, *, heads=8, dim_head=16):
    """Fused multi-head self-attention.

    x:      (B, n, dim)
    w_qkv:  (dim, 3*heads*dim_head)   -- transpose of nn.Linear's (out, in) weight
    w_out:  (heads*dim_head, dim)     -- transpose of nn.Linear's (out, in) weight
    b_out:  (dim,)
    returns (B, n, dim)
    """
    B, n, dim = x.shape
    inner = heads * dim_head
    assert w_qkv.shape == (dim, 3 * inner)
    assert w_out.shape == (inner, dim)
    assert b_out.shape == (dim,)

    # Faithful to the PyTorch forward: scale by seq_len ** -0.5.
    scale = float(n) ** -0.5

    # Lane-dense output: pad the projection's output dim up to a multiple of 128
    # so the kernel's stores are unmasked; slice the padding off afterwards.
    d_pad = ((dim + 127) // 128) * 128
    w_out_p = jnp.zeros((inner, d_pad), w_out.dtype).at[:, :dim].set(w_out)
    b_out_p = jnp.zeros((1, d_pad), b_out.dtype).at[:, :dim].set(b_out.reshape(1, dim))

    kernel = functools.partial(_attention_kernel,
                               heads=heads, dim_head=dim_head, scale=scale)

    # Advisory cost estimate for XLA's scheduler.
    flops = (2 * B * n * dim * 3 * inner            # QKV projection
             + 2 * B * heads * n * n * dim_head * 2  # q@k^T and attn@v
             + 2 * B * n * inner * d_pad)            # output projection
    bytes_accessed = 4 * (x.size + w_qkv.size + w_out_p.size + b_out_p.size
                          + B * n * d_pad)
    transcendentals = B * heads * n * n              # exp in softmax

    out = pl.pallas_call(
        kernel,
        out_shape=jax.ShapeDtypeStruct((B, n, d_pad), x.dtype),
        grid_spec=pltpu.PrefetchScalarGridSpec(
            num_scalar_prefetch=0,
            grid=(B,),
            in_specs=[
                pl.BlockSpec((1, n, dim), lambda b: (b, 0, 0)),        # x tile (pipelined)
                pl.BlockSpec((dim, 3 * inner), lambda b: (0, 0)),      # Wqkv (resident)
                pl.BlockSpec((inner, d_pad), lambda b: (0, 0)),        # Wout (resident)
                pl.BlockSpec((1, d_pad), lambda b: (0, 0)),            # bout
            ],
            out_specs=pl.BlockSpec((1, n, d_pad), lambda b: (b, 0, 0)),
        ),
        compiler_params=pltpu.CompilerParams(
            dimension_semantics=("parallel",),     # batch axis -> megacore sharding
            vmem_limit_bytes=64 * 1024 * 1024,
        ),
        cost_estimate=pl.CostEstimate(flops=flops,
                                      transcendentals=transcendentals,
                                      bytes_accessed=bytes_accessed),
    )(x, w_qkv, w_out_p, b_out_p)

    return out[:, :, :dim]


def _reference(x, w_qkv, w_out, b_out, *, heads, dim_head):
    B, n, dim = x.shape
    inner = heads * dim_head
    scale = float(n) ** -0.5
    hi = jax.lax.Precision.HIGHEST
    qkv = jnp.einsum('bnc,ck->bnk', x, w_qkv, precision=hi)
    q, k, v = jnp.split(qkv, 3, axis=-1)
    to_h = lambda t: t.reshape(B, n, heads, dim_head).transpose(0, 2, 1, 3)
    q, k, v = map(to_h, (q, k, v))
    sim = jnp.einsum('bhid,bhjd->bhij', q, k, precision=hi) * scale
    attn = jax.nn.softmax(sim, axis=-1)
    out = jnp.einsum('bhij,bhjd->bhid', attn, v, precision=hi)
    out = out.transpose(0, 2, 1, 3).reshape(B, n, inner)
    return jnp.einsum('bnk,kc->bnc', out, w_out, precision=hi) + b_out


if __name__ == "__main__":
    key = jax.random.PRNGKey(0)

    # Small shapes consistent with the module: dim=32, heads=8, dim_head=16.
    B, n, dim = 2, 8, 32
    heads, dim_head = 8, 16
    inner = heads * dim_head

    kx, kqkv, kout, kbout = jax.random.split(key, 4)
    x = jax.random.normal(kx, (B, n, dim), dtype=jnp.float32)

    # PyTorch-Linear-like uniform init, stored pre-transposed as (in, out).
    bqkv = 1.0 / jnp.sqrt(dim)
    w_qkv = jax.random.uniform(kqkv, (dim, 3 * inner), jnp.float32, -bqkv, bqkv)
    bo = 1.0 / jnp.sqrt(inner)
    w_out = jax.random.uniform(kout, (inner, dim), jnp.float32, -bo, bo)
    b_out = jax.random.uniform(kbout, (dim,), jnp.float32, -bo, bo)

    out = attention_pallas(x, w_qkv, w_out, b_out, heads=heads, dim_head=dim_head)
    out = jax.block_until_ready(out)

    ref = _reference(x, w_qkv, w_out, b_out, heads=heads, dim_head=dim_head)
    assert out.shape == (B, n, dim)
    assert jnp.allclose(out, ref, atol=2e-4, rtol=2e-4), \
        float(jnp.max(jnp.abs(out - ref)))

    print("KERNEL_OK")
</pallas_src>

<mosaic_0001>
module attributes {stable_mosaic.version = 11 : i64} {
  func.func @_attention_kernel(%arg0: i32, %arg1: memref<1x8x32xf32, #tpu.memory_space<vmem>>, %arg2: memref<32x384xf32, #tpu.memory_space<vmem>>, %arg3: memref<128x128xf32, #tpu.memory_space<vmem>>, %arg4: memref<1x128xf32, #tpu.memory_space<vmem>>, %arg5: memref<1x8x128xf32, #tpu.memory_space<vmem>>) attributes {dimension_semantics = [#tpu.dimension_semantics<parallel>], iteration_bounds = array<i64: 2>, scalar_prefetch = 0 : i64, scratch_operands = 0 : i64, tpu.core_type = #tpu.core_type<tc>, window_params = [{transform_indices = @transform_0, window_bounds = array<i64: 1, 8, 32>}, {pipeline_mode = #tpu.pipeline_mode<synchronous>, transform_indices = @transform_1, window_bounds = array<i64: 32, 384>}, {pipeline_mode = #tpu.pipeline_mode<synchronous>, transform_indices = @transform_2, window_bounds = array<i64: 128, 128>}, {pipeline_mode = #tpu.pipeline_mode<synchronous>, transform_indices = @transform_3, window_bounds = array<i64: 1, 128>}, {transform_indices = @transform_4, window_bounds = array<i64: 1, 8, 128>}]} {
    %c0 = arith.constant 0 : index
    %c0_0 = arith.constant 0 : index
    %c0_1 = arith.constant 0 : index
    %0 = vector.load %arg1[%c0, %c0_0, %c0_1] : memref<1x8x32xf32, #tpu.memory_space<vmem>>, vector<1x8x32xf32>
    %1 = vector.shape_cast %0 : vector<1x8x32xf32> to vector<8x32xf32>
    %c0_2 = arith.constant 0 : index
    %c0_3 = arith.constant 0 : index
    %2 = vector.load %arg2[%c0_2, %c0_3] : memref<32x384xf32, #tpu.memory_space<vmem>>, vector<32x384xf32>
    %cst = arith.constant dense<0.000000e+00> : vector<8x384xf32>
    %3 = tpu.matmul %1, %2, %cst {dimension_numbers = #tpu.dot_dimension_numbers<[1], [0], [0], [1], [0, 0, 1, 1], [], []>} : vector<8x32xf32>, vector<32x384xf32>, vector<8x384xf32> -> vector<8x384xf32>
    %4 = vector.extract_strided_slice %3 {offsets = [0, 0], sizes = [8, 128], strides = [1, 1]} : vector<8x384xf32> to vector<8x128xf32>
    %5 = vector.extract_strided_slice %3 {offsets = [0, 128], sizes = [8, 128], strides = [1, 1]} : vector<8x384xf32> to vector<8x128xf32>
    %6 = vector.extract_strided_slice %3 {offsets = [0, 256], sizes = [8, 128], strides = [1, 1]} : vector<8x384xf32> to vector<8x128xf32>
    %7 = vector.extract_strided_slice %4 {offsets = [0, 0], sizes = [8, 16], strides = [1, 1]} : vector<8x128xf32> to vector<8x16xf32>
    %8 = vector.extract_strided_slice %5 {offsets = [0, 0], sizes = [8, 16], strides = [1, 1]} : vector<8x128xf32> to vector<8x16xf32>
    %9 = vector.extract_strided_slice %6 {offsets = [0, 0], sizes = [8, 16], strides = [1, 1]} : vector<8x128xf32> to vector<8x16xf32>
    %cst_4 = arith.constant dense<0.000000e+00> : vector<8x8xf32>
    %10 = tpu.matmul %7, %8, %cst_4 {dimension_numbers = #tpu.dot_dimension_numbers<[1], [1], [0], [0], [0, 0, 1, 0], [], []>} : vector<8x16xf32>, vector<8x16xf32>, vector<8x8xf32> -> vector<8x8xf32>
    %cst_5 = arith.constant 0.353553385 : f32
    %11 = vector.broadcast %cst_5 : f32 to vector<8x8xf32>
    %12 = arith.mulf %10, %11 : vector<8x8xf32>
    %cst_6 = arith.constant dense<0xFF800000> : vector<8xf32>
    %13 = vector.multi_reduction <maximumf>, %12, %cst_6 [1] : vector<8x8xf32> to vector<8xf32>
    %14 = vector.shape_cast %13 : vector<8xf32> to vector<8x1xf32>
    %15 = vector.broadcast %14 : vector<8x1xf32> to vector<8x8xf32>
    %16 = arith.subf %12, %15 : vector<8x8xf32>
    %17 = math.exp %16 : vector<8x8xf32>
    %cst_7 = arith.constant dense<0.000000e+00> : vector<8xf32>
    %18 = vector.multi_reduction <add>, %17, %cst_7 [1] : vector<8x8xf32> to vector<8xf32>
    %19 = vector.shape_cast %18 : vector<8xf32> to vector<8x1xf32>
    %20 = vector.broadcast %19 : vector<8x1xf32> to vector<8x8xf32>
    %21 = arith.divf %17, %20 : vector<8x8xf32>
    %cst_8 = arith.constant dense<0.000000e+00> : vector<8x16xf32>
    %22 = tpu.matmul %21, %9, %cst_8 {dimension_numbers = #tpu.dot_dimension_numbers<[1], [0], [0], [1], [0, 0, 1, 1], [], []>} : vector<8x8xf32>, vector<8x16xf32>, vector<8x16xf32> -> vector<8x16xf32>
    %23 = vector.extract_strided_slice %4 {offsets = [0, 16], sizes = [8, 16], strides = [1, 1]} : vector<8x128xf32> to vector<8x16xf32>
    %24 = vector.extract_strided_slice %5 {offsets = [0, 16], sizes = [8, 16], strides = [1, 1]} : vector<8x128xf32> to vector<8x16xf32>
    %25 = vector.extract_strided_slice %6 {offsets = [0, 16], sizes = [8, 16], strides = [1, 1]} : vector<8x128xf32> to vector<8x16xf32>
    %cst_9 = arith.constant dense<0.000000e+00> : vector<8x8xf32>
    %26 = tpu.matmul %23, %24, %cst_9 {dimension_numbers = #tpu.dot_dimension_numbers<[1], [1], [0], [0], [0, 0, 1, 0], [], []>} : vector<8x16xf32>, vector<8x16xf32>, vector<8x8xf32> -> vector<8x8xf32>
    %cst_10 = arith.constant 0.353553385 : f32
    %27 = vector.broadcast %cst_10 : f32 to vector<8x8xf32>
    %28 = arith.mulf %26, %27 : vector<8x8xf32>
    %cst_11 = arith.constant dense<0xFF800000> : vector<8xf32>
    %29 = vector.multi_reduction <maximumf>, %28, %cst_11 [1] : vector<8x8xf32> to vector<8xf32>
    %30 = vector.shape_cast %29 : vector<8xf32> to vector<8x1xf32>
    %31 = vector.broadcast %30 : vector<8x1xf32> to vector<8x8xf32>
    %32 = arith.subf %28, %31 : vector<8x8xf32>
    %33 = math.exp %32 : vector<8x8xf32>
    %cst_12 = arith.constant dense<0.000000e+00> : vector<8xf32>
    %34 = vector.multi_reduction <add>, %33, %cst_12 [1] : vector<8x8xf32> to vector<8xf32>
    %35 = vector.shape_cast %34 : vector<8xf32> to vector<8x1xf32>
    %36 = vector.broadcast %35 : vector<8x1xf32> to vector<8x8xf32>
    %37 = arith.divf %33, %36 : vector<8x8xf32>
    %cst_13 = arith.constant dense<0.000000e+00> : vector<8x16xf32>
    %38 = tpu.matmul %37, %25, %cst_13 {dimension_numbers = #tpu.dot_dimension_numbers<[1], [0], [0], [1], [0, 0, 1, 1], [], []>} : vector<8x8xf32>, vector<8x16xf32>, vector<8x16xf32> -> vector<8x16xf32>
    %39 = vector.extract_strided_slice %4 {offsets = [0, 32], sizes = [8, 16], strides = [1, 1]} : vector<8x128xf32> to vector<8x16xf32>
    %40 = vector.extract_strided_slice %5 {offsets = [0, 32], sizes = [8, 16], strides = [1, 1]} : vector<8x128xf32> to vector<8x16xf32>
    %41 = vector.extract_strided_slice %6 {offsets = [0, 32], sizes = [8, 16], strides = [1, 1]} : vector<8x128xf32> to vector<8x16xf32>
    %cst_14 = arith.constant dense<0.000000e+00> : vector<8x8xf32>
    %42 = tpu.matmul %39, %40, %cst_14 {dimension_numbers = #tpu.dot_dimension_numbers<[1], [1], [0], [0], [0, 0, 1, 0], [], []>} : vector<8x16xf32>, vector<8x16xf32>, vector<8x8xf32> -> vector<8x8xf32>
    %cst_15 = arith.constant 0.353553385 : f32
    %43 = vector.broadcast %cst_15 : f32 to vector<8x8xf32>
    %44 = arith.mulf %42, %43 : vector<8x8xf32>
    %cst_16 = arith.constant dense<0xFF800000> : vector<8xf32>
    %45 = vector.multi_reduction <maximumf>, %44, %cst_16 [1] : vector<8x8xf32> to vector<8xf32>
    %46 = vector.shape_cast %45 : vector<8xf32> to vector<8x1xf32>
    %47 = vector.broadcast %46 : vector<8x1xf32> to vector<8x8xf32>
    %48 = arith.subf %44, %47 : vector<8x8xf32>
    %49 = math.exp %48 : vector<8x8xf32>
    %cst_17 = arith.constant dense<0.000000e+00> : vector<8xf32>
    %50 = vector.multi_reduction <add>, %49, %cst_17 [1] : vector<8x8xf32> to vector<8xf32>
    %51 = vector.shape_cast %50 : vector<8xf32> to vector<8x1xf32>
    %52 = vector.broadcast %51 : vector<8x1xf32> to vector<8x8xf32>
    %53 = arith.divf %49, %52 : vector<8x8xf32>
    %cst_18 = arith.constant dense<0.000000e+00> : vector<8x16xf32>
    %54 = tpu.matmul %53, %41, %cst_18 {dimension_numbers = #tpu.dot_dimension_numbers<[1], [0], [0], [1], [0, 0, 1, 1], [], []>} : vector<8x8xf32>, vector<8x16xf32>, vector<8x16xf32> -> vector<8x16xf32>
    %55 = vector.extract_strided_slice %4 {offsets = [0, 48], sizes = [8, 16], strides = [1, 1]} : vector<8x128xf32> to vector<8x16xf32>
    %56 = vector.extract_strided_slice %5 {offsets = [0, 48], sizes = [8, 16], strides = [1, 1]} : vector<8x128xf32> to vector<8x16xf32>
    %57 = vector.extract_strided_slice %6 {offsets = [0, 48], sizes = [8, 16], strides = [1, 1]} : vector<8x128xf32> to vector<8x16xf32>
    %cst_19 = arith.constant dense<0.000000e+00> : vector<8x8xf32>
    %58 = tpu.matmul %55, %56, %cst_19 {dimension_numbers = #tpu.dot_dimension_numbers<[1], [1], [0], [0], [0, 0, 1, 0], [], []>} : vector<8x16xf32>, vector<8x16xf32>, vector<8x8xf32> -> vector<8x8xf32>
    %cst_20 = arith.constant 0.353553385 : f32
    %59 = vector.broadcast %cst_20 : f32 to vector<8x8xf32>
    %60 = arith.mulf %58, %59 : vector<8x8xf32>
    %cst_21 = arith.constant dense<0xFF800000> : vector<8xf32>
    %61 = vector.multi_reduction <maximumf>, %60, %cst_21 [1] : vector<8x8xf32> to vector<8xf32>
    %62 = vector.shape_cast %61 : vector<8xf32> to vector<8x1xf32>
    %63 = vector.broadcast %62 : vector<8x1xf32> to vector<8x8xf32>
    %64 = arith.subf %60, %63 : vector<8x8xf32>
    %65 = math.exp %64 : vector<8x8xf32>
    %cst_22 = arith.constant dense<0.000000e+00> : vector<8xf32>
    %66 = vector.multi_reduction <add>, %65, %cst_22 [1] : vector<8x8xf32> to vector<8xf32>
    %67 = vector.shape_cast %66 : vector<8xf32> to vector<8x1xf32>
    %68 = vector.broadcast %67 : vector<8x1xf32> to vector<8x8xf32>
    %69 = arith.divf %65, %68 : vector<8x8xf32>
    %cst_23 = arith.constant dense<0.000000e+00> : vector<8x16xf32>
    %70 = tpu.matmul %69, %57, %cst_23 {dimension_numbers = #tpu.dot_dimension_numbers<[1], [0], [0], [1], [0, 0, 1, 1], [], []>} : vector<8x8xf32>, vector<8x16xf32>, vector<8x16xf32> -> vector<8x16xf32>
    %71 = vector.extract_strided_slice %4 {offsets = [0, 64], sizes = [8, 16], strides = [1, 1]} : vector<8x128xf32> to vector<8x16xf32>
    %72 = vector.extract_strided_slice %5 {offsets = [0, 64], sizes = [8, 16], strides = [1, 1]} : vector<8x128xf32> to vector<8x16xf32>
    %73 = vector.extract_strided_slice %6 {offsets = [0, 64], sizes = [8, 16], strides = [1, 1]} : vector<8x128xf32> to vector<8x16xf32>
    %cst_24 = arith.constant dense<0.000000e+00> : vector<8x8xf32>
    %74 = tpu.matmul %71, %72, %cst_24 {dimension_numbers = #tpu.dot_dimension_numbers<[1], [1], [0], [0], [0, 0, 1, 0], [], []>} : vector<8x16xf32>, vector<8x16xf32>, vector<8x8xf32> -> vector<8x8xf32>
    %cst_25 = arith.constant 0.353553385 : f32
    %75 = vector.broadcast %cst_25 : f32 to vector<8x8xf32>
    %76 = arith.mulf %74, %75 : vector<8x8xf32>
    %cst_26 = arith.constant dense<0xFF800000> : vector<8xf32>
    %77 = vector.multi_reduction <maximumf>, %76, %cst_26 [1] : vector<8x8xf32> to vector<8xf32>
    %78 = vector.shape_cast %77 : vector<8xf32> to vector<8x1xf32>
    %79 = vector.broadcast %78 : vector<8x1xf32> to vector<8x8xf32>
    %80 = arith.subf %76, %79 : vector<8x8xf32>
    %81 = math.exp %80 : vector<8x8xf32>
    %cst_27 = arith.constant dense<0.000000e+00> : vector<8xf32>
    %82 = vector.multi_reduction <add>, %81, %cst_27 [1] : vector<8x8xf32> to vector<8xf32>
    %83 = vector.shape_cast %82 : vector<8xf32> to vector<8x1xf32>
    %84 = vector.broadcast %83 : vector<8x1xf32> to vector<8x8xf32>
    %85 = arith.divf %81, %84 : vector<8x8xf32>
    %cst_28 = arith.constant dense<0.000000e+00> : vector<8x16xf32>
    %86 = tpu.matmul %85, %73, %cst_28 {dimension_numbers = #tpu.dot_dimension_numbers<[1], [0], [0], [1], [0, 0, 1, 1], [], []>} : vector<8x8xf32>, vector<8x16xf32>, vector<8x16xf32> -> vector<8x16xf32>
    %87 = vector.extract_strided_slice %4 {offsets = [0, 80], sizes = [8, 16], strides = [1, 1]} : vector<8x128xf32> to vector<8x16xf32>
    %88 = vector.extract_strided_slice %5 {offsets = [0, 80], sizes = [8, 16], strides = [1, 1]} : vector<8x128xf32> to vector<8x16xf32>
    %89 = vector.extract_strided_slice %6 {offsets = [0, 80], sizes = [8, 16], strides = [1, 1]} : vector<8x128xf32> to vector<8x16xf32>
    %cst_29 = arith.constant dense<0.000000e+00> : vector<8x8xf32>
    %90 = tpu.matmul %87, %88, %cst_29 {dimension_numbers = #tpu.dot_dimension_numbers<[1], [1], [0], [0], [0, 0, 1, 0], [], []>} : vector<8x16xf32>, vector<8x16xf32>, vector<8x8xf32> -> vector<8x8xf32>
    %cst_30 = arith.constant 0.353553385 : f32
    %91 = vector.broadcast %cst_30 : f32 to vector<8x8xf32>
    %92 = arith.mulf %90, %91 : vector<8x8xf32>
    %cst_31 = arith.constant dense<0xFF800000> : vector<8xf32>
    %93 = vector.multi_reduction <maximumf>, %92, %cst_31 [1] : vector<8x8xf32> to vector<8xf32>
    %94 = vector.shape_cast %93 : vector<8xf32> to vector<8x1xf32>
    %95 = vector.broadcast %94 : vector<8x1xf32> to vector<8x8xf32>
    %96 = arith.subf %92, %95 : vector<8x8xf32>
    %97 = math.exp %96 : vector<8x8xf32>
    %cst_32 = arith.constant dense<0.000000e+00> : vector<8xf32>
    %98 = vector.multi_reduction <add>, %97, %cst_32 [1] : vector<8x8xf32> to vector<8xf32>
    %99 = vector.shape_cast %98 : vector<8xf32> to vector<8x1xf32>
    %100 = vector.broadcast %99 : vector<8x1xf32> to vector<8x8xf32>
    %101 = arith.divf %97, %100 : vector<8x8xf32>
    %cst_33 = arith.constant dense<0.000000e+00> : vector<8x16xf32>
    %102 = tpu.matmul %101, %89, %cst_33 {dimension_numbers = #tpu.dot_dimension_numbers<[1], [0], [0], [1], [0, 0, 1, 1], [], []>} : vector<8x8xf32>, vector<8x16xf32>, vector<8x16xf32> -> vector<8x16xf32>
    %103 = vector.extract_strided_slice %4 {offsets = [0, 96], sizes = [8, 16], strides = [1, 1]} : vector<8x128xf32> to vector<8x16xf32>
    %104 = vector.extract_strided_slice %5 {offsets = [0, 96], sizes = [8, 16], strides = [1, 1]} : vector<8x128xf32> to vector<8x16xf32>
    %105 = vector.extract_strided_slice %6 {offsets = [0, 96], sizes = [8, 16], strides = [1, 1]} : vector<8x128xf32> to vector<8x16xf32>
    %cst_34 = arith.constant dense<0.000000e+00> : vector<8x8xf32>
    %106 = tpu.matmul %103, %104, %cst_34 {dimension_numbers = #tpu.dot_dimension_numbers<[1], [1], [0], [0], [0, 0, 1, 0], [], []>} : vector<8x16xf32>, vector<8x16xf32>, vector<8x8xf32> -> vector<8x8xf32>
    %cst_35 = arith.constant 0.353553385 : f32
    %107 = vector.broadcast %cst_35 : f32 to vector<8x8xf32>
    %108 = arith.mulf %106, %107 : vector<8x8xf32>
    %cst_36 = arith.constant dense<0xFF800000> : vector<8xf32>
    %109 = vector.multi_reduction <maximumf>, %108, %cst_36 [1] : vector<8x8xf32> to vector<8xf32>
    %110 = vector.shape_cast %109 : vector<8xf32> to vector<8x1xf32>
    %111 = vector.broadcast %110 : vector<8x1xf32> to vector<8x8xf32>
    %112 = arith.subf %108, %111 : vector<8x8xf32>
    %113 = math.exp %112 : vector<8x8xf32>
    %cst_37 = arith.constant dense<0.000000e+00> : vector<8xf32>
    %114 = vector.multi_reduction <add>, %113, %cst_37 [1] : vector<8x8xf32> to vector<8xf32>
    %115 = vector.shape_cast %114 : vector<8xf32> to vector<8x1xf32>
    %116 = vector.broadcast %115 : vector<8x1xf32> to vector<8x8xf32>
    %117 = arith.divf %113, %116 : vector<8x8xf32>
    %cst_38 = arith.constant dense<0.000000e+00> : vector<8x16xf32>
    %118 = tpu.matmul %117, %105, %cst_38 {dimension_numbers = #tpu.dot_dimension_numbers<[1], [0], [0], [1], [0, 0, 1, 1], [], []>} : vector<8x8xf32>, vector<8x16xf32>, vector<8x16xf32> -> vector<8x16xf32>
    %119 = vector.extract_strided_slice %4 {offsets = [0, 112], sizes = [8, 16], strides = [1, 1]} : vector<8x128xf32> to vector<8x16xf32>
    %120 = vector.extract_strided_slice %5 {offsets = [0, 112], sizes = [8, 16], strides = [1, 1]} : vector<8x128xf32> to vector<8x16xf32>
    %121 = vector.extract_strided_slice %6 {offsets = [0, 112], sizes = [8, 16], strides = [1, 1]} : vector<8x128xf32> to vector<8x16xf32>
    %cst_39 = arith.constant dense<0.000000e+00> : vector<8x8xf32>
    %122 = tpu.matmul %119, %120, %cst_39 {dimension_numbers = #tpu.dot_dimension_numbers<[1], [1], [0], [0], [0, 0, 1, 0], [], []>} : vector<8x16xf32>, vector<8x16xf32>, vector<8x8xf32> -> vector<8x8xf32>
    %cst_40 = arith.constant 0.353553385 : f32
    %123 = vector.broadcast %cst_40 : f32 to vector<8x8xf32>
    %124 = arith.mulf %122, %123 : vector<8x8xf32>
    %cst_41 = arith.constant dense<0xFF800000> : vector<8xf32>
    %125 = vector.multi_reduction <maximumf>, %124, %cst_41 [1] : vector<8x8xf32> to vector<8xf32>
    %126 = vector.shape_cast %125 : vector<8xf32> to vector<8x1xf32>
    %127 = vector.broadcast %126 : vector<8x1xf32> to vector<8x8xf32>
    %128 = arith.subf %124, %127 : vector<8x8xf32>
    %129 = math.exp %128 : vector<8x8xf32>
    %cst_42 = arith.constant dense<0.000000e+00> : vector<8xf32>
    %130 = vector.multi_reduction <add>, %129, %cst_42 [1] : vector<8x8xf32> to vector<8xf32>
    %131 = vector.shape_cast %130 : vector<8xf32> to vector<8x1xf32>
    %132 = vector.broadcast %131 : vector<8x1xf32> to vector<8x8xf32>
    %133 = arith.divf %129, %132 : vector<8x8xf32>
    %cst_43 = arith.constant dense<0.000000e+00> : vector<8x16xf32>
    %134 = tpu.matmul %133, %121, %cst_43 {dimension_numbers = #tpu.dot_dimension_numbers<[1], [0], [0], [1], [0, 0, 1, 1], [], []>} : vector<8x8xf32>, vector<8x16xf32>, vector<8x16xf32> -> vector<8x16xf32>
    %135 = tpu.concatenate %22, %38, %54, %70, %86, %102, %118, %134 in 1 : vector<8x16xf32>, vector<8x16xf32>, vector<8x16xf32>, vector<8x16xf32>, vector<8x16xf32>, vector<8x16xf32>, vector<8x16xf32>, vector<8x16xf32> -> vector<8x128xf32>
    %c0_44 = arith.constant 0 : index
    %c0_45 = arith.constant 0 : index
    %136 = vector.load %arg3[%c0_44, %c0_45] : memref<128x128xf32, #tpu.memory_space<vmem>>, vector<128x128xf32>
    %cst_46 = arith.constant dense<0.000000e+00> : vector<8x128xf32>
    %137 = tpu.matmul %135, %136, %cst_46 {dimension_numbers = #tpu.dot_dimension_numbers<[1], [0], [0], [1], [0, 0, 1, 1], [], []>} : vector<8x128xf32>, vector<128x128xf32>, vector<8x128xf32> -> vector<8x128xf32>
    %c0_47 = arith.constant 0 : index
    %c0_48 = arith.constant 0 : index
    %138 = vector.load %arg4[%c0_47, %c0_48] : memref<1x128xf32, #tpu.memory_space<vmem>>, vector<1x128xf32>
    %139 = vector.broadcast %138 : vector<1x128xf32> to vector<8x128xf32>
    %140 = arith.addf %137, %139 : vector<8x128xf32>
    %c0_49 = arith.constant 0 : index
    %c0_50 = arith.constant 0 : index
    %c0_51 = arith.constant 0 : index
    %141 = vector.load %arg5[%c0_49, %c0_50, %c0_51] : memref<1x8x128xf32, #tpu.memory_space<vmem>>, vector<1x8x128xf32>
    %142 = vector.shape_cast %141 : vector<1x8x128xf32> to vector<8x128xf32>
    %143 = vector.shape_cast %140 : vector<8x128xf32> to vector<1x8x128xf32>
    tpu.vector_store %arg5[%c0_49, %c0_50, %c0_51], %143 {strides = array<i32>} : memref<1x8x128xf32, #tpu.memory_space<vmem>>, vector<1x8x128xf32>,
    return
  }
  func.func @transform_0(%arg0: i32) -> (i32, i32, i32) {
    %c0_i32 = arith.constant 0 : i32
    %c0_i32_0 = arith.constant 0 : i32
    %c0_i32_1 = arith.constant 0 : i32
    return %arg0, %c0_i32, %c0_i32_0 : i32, i32, i32
  }
  func.func @transform_1(%arg0: i32) -> (i32, i32) {
    %c0_i32 = arith.constant 0 : i32
    %c0_i32_0 = arith.constant 0 : i32
    %c0_i32_1 = arith.constant 0 : i32
    return %c0_i32, %c0_i32_0 : i32, i32
  }
  func.func @transform_2(%arg0: i32) -> (i32, i32) {
    %c0_i32 = arith.constant 0 : i32
    %c0_i32_0 = arith.constant 0 : i32
    %c0_i32_1 = arith.constant 0 : i32
    return %c0_i32, %c0_i32_0 : i32, i32
  }
  func.func @transform_3(%arg0: i32) -> (i32, i32) {
    %c0_i32 = arith.constant 0 : i32
    %c0_i32_0 = arith.constant 0 : i32
    %c0_i32_1 = arith.constant 0 : i32
    return %c0_i32, %c0_i32_0 : i32, i32
  }
  func.func @transform_4(%arg0: i32) -> (i32, i32, i32) {
    %c0_i32 = arith.constant 0 : i32
    %c0_i32_0 = arith.constant 0 : i32
    %c0_i32_1 = arith.constant 0 : i32
    return %arg0, %c0_i32, %c0_i32_0 : i32, i32, i32
  }
}

</mosaic_0001>

<llo_original>
// kernel: tpu_custom_call.1
$region0: #{tpu_custom_call.1}
  #allocation0 [shape = 'u32[]', space=smem, size = 0x4, offset = 0x4, fixed_abs, tag = 'smem constant byte address 0x4 - core index']
  #allocation1 [shape = 'u32[144,128]{1,0:T(1,128)}', space=vmem, size = 0x12000, scoped, tag = 'internal scratch']
  %s0 = inlined_call_operand.hbm [shape: f32[2,8,32], index: 0, kind: input, shape index: {}]
  %s1 = inlined_call_operand.hbm [shape: f32[32,384], index: 1, kind: input, shape index: {}]
  %s2 = inlined_call_operand.hbm [shape: f32[128,128], index: 2, kind: input, shape index: {}]
  %s3 = inlined_call_operand.vmem [shape: f32[1,128], index: 3, kind: input, shape index: {}]
  %s4 = inlined_call_operand.hbm [shape: f32[2,8,128], index: 4, kind: output, shape index: {}]
  %s5 = sld [smem:[#allocation0]]
  $region61: #{tpu_custom_call.1} parent=0
    _
  %s7 = ssub.s32 1, %s5
  %s8 = scalar_select 0, %s7, %s5
  $region1: #{tpu_custom_call.1} parent=0
    #allocation2 [shape = 'u8[8192]{0}', space=vmem, size = 0x2000, scoped, tag = 'input window, operand 0']
    #allocation3 [shape = 's32[2]{0}', space=sflag, size = 0x8, scoped, tag = 'scoped memory for tpu_custom_call.1']
    #allocation4 [shape = 's32[2]{0}', space=sflag, size = 0x8, scoped, tag = 'scoped memory for tpu_custom_call.1']
    #allocation5 [shape = 'u8[49152]{0}', space=vmem, size = 0xc000, scoped, tag = 'input window, operand 1, single buffered']
    #allocation6 [shape = 's32[1]{0}', space=sflag, size = 0x4, scoped, tag = 'scoped memory for tpu_custom_call.1']
    #allocation7 [shape = 'u8[65536]{0}', space=vmem, size = 0x10000, scoped, tag = 'input window, operand 2, single buffered']
    #allocation8 [shape = 'u8[8192]{0}', space=vmem, size = 0x2000, scoped, tag = 'output window, operand 0']
    %9 = vsyncpa [#allocation3], 0
    %s10 = scalar_lea.sflag [#allocation3], 1
    %11 = vsyncpa %s10, 0
    %12 = vsyncpa [#allocation6], 0
    %13 = vsyncpa [#allocation4], 0
    %s14 = scalar_lea.sflag [#allocation4], 1
    %15 = vsyncpa %s14, 0
    loop: start=0, step=1, limit=4
    $region2: #{tpu_custom_call.1} parent=1 // loop_pre_header
      _
    $region3: #{tpu_custom_call.1} parent=1 // loop_header
      %s17 = sphi 0, %s21
      %p18 = scmp.ge.s32.totalorder %s17, 4
      %s27 = sphi 0, %s29
      %s30 = sphi 0, %s27
      %s31 = sphi 0, %s30
      %s47 = sphi 0, %s31
      %s51 = sphi 0, %s51
      %s53 = sphi 0, %s51
      %s54 = sphi 0, %s53
      %s68 = sphi 0, %s54
      %s72 = sphi 0, %s72
      %s74 = sphi 0, %s72
      %s75 = sphi 0, %s74
      %s89 = sphi 0, %s75
      %s93 = sphi 0, %s93
      %s95 = sphi 0, %s93
      %s96 = sphi 0, %s95
      %s110 = sphi 0, %s96
      %s116 = sphi 0, %s118
      %s119 = sphi 0, %s116
      %s120 = sphi 0, %s119
      %s136 = sphi 0, %s120
    $region4: #{tpu_custom_call.1} parent=1 // loop_header_branch
      %20 = sbr.rel (%p18) target = $region8
    $region5: #{tpu_custom_call.1} parent=1 // loop_body
      %s22 = ssub.s32 %s17, 1
      %s23 = ssub.s32 %s17, 2
      %s24 = sadd.s32 %s17, 1
      %s25 = ssub.s32 %s17, %s24
      %p26 = scmp.eq.s32.totalorder %s25, 0
      %s28 = sadd.s32 %s27, 1
      %s29 = scalar_select %p26, %s27, %s28
      %p32 = pneg %p26
      %p33 = scmp.eq.s32.totalorder %s17, 1
      %p34 = por %p32, %p33
      %p35 = scmp.ne.s32.totalorder %s27, %s30
      %p36 = scmp.eq.s32.totalorder %s17, 0
      %p37 = por %p35, %p36
      %p38 = scmp.ne.s32.totalorder %s27, %s30
      %p39 = scmp.eq.s32.totalorder %s22, 1
      %p40 = por %p38, %p39
      %p41 = scmp.ne.s32.totalorder %s30, %s31
      %p42 = scmp.eq.s32.totalorder %s22, 0
      %p43 = por %p41, %p42
      %p44 = scmp.ne.s32.totalorder %s30, %s31
      %p45 = scmp.eq.s32.totalorder %s23, 1
      %p46 = por %p44, %p45
      %p48 = scmp.ne.s32.totalorder %s31, %s47
      %p49 = scmp.eq.s32.totalorder %s23, 0
      %p50 = por %p48, %p49
      %s52 = sadd.s32 %s51, 1
      %p55 = scmp.eq.s32.totalorder %s17, 1
      %p56 = scmp.ne.s32.totalorder %s51, %s53
      %p57 = scmp.eq.s32.totalorder %s17, 0
      %p58 = por %p56, %p57
      %p59 = scmp.ne.s32.totalorder %s51, %s53
      %p60 = scmp.eq.s32.totalorder %s22, 1
      %p61 = por %p59, %p60
      %p62 = scmp.ne.s32.totalorder %s53, %s54
      %p63 = scmp.eq.s32.totalorder %s22, 0
      %p64 = por %p62, %p63
      %p65 = scmp.ne.s32.totalorder %s53, %s54
      %p66 = scmp.eq.s32.totalorder %s23, 1
      %p67 = por %p65, %p66
      %p69 = scmp.ne.s32.totalorder %s54, %s68
      %p70 = scmp.eq.s32.totalorder %s23, 0
      %p71 = por %p69, %p70
      %s73 = sadd.s32 %s72, 1
      %p76 = scmp.eq.s32.totalorder %s17, 1
      %p77 = scmp.ne.s32.totalorder %s72, %s74
      %p78 = scmp.eq.s32.totalorder %s17, 0
      %p79 = por %p77, %p78
      %p80 = scmp.ne.s32.totalorder %s72, %s74
      %p81 = scmp.eq.s32.totalorder %s22, 1
      %p82 = por %p80, %p81
      %p83 = scmp.ne.s32.totalorder %s74, %s75
      %p84 = scmp.eq.s32.totalorder %s22, 0
      %p85 = por %p83, %p84
      %p86 = scmp.ne.s32.totalorder %s74, %s75
      %p87 = scmp.eq.s32.totalorder %s23, 1
      %p88 = por %p86, %p87
      %p90 = scmp.ne.s32.totalorder %s75, %s89
      %p91 = scmp.eq.s32.totalorder %s23, 0
      %p92 = por %p90, %p91
      %s94 = sadd.s32 %s93, 1
      %p97 = scmp.eq.s32.totalorder %s17, 1
      %p98 = scmp.ne.s32.totalorder %s93, %s95
      %p99 = scmp.eq.s32.totalorder %s17, 0
      %p100 = por %p98, %p99
      %p101 = scmp.ne.s32.totalorder %s93, %s95
      %p102 = scmp.eq.s32.totalorder %s22, 1
      %p103 = por %p101, %p102
      %p104 = scmp.ne.s32.totalorder %s95, %s96
      %p105 = scmp.eq.s32.totalorder %s22, 0
      %p106 = por %p104, %p105
      %p107 = scmp.ne.s32.totalorder %s95, %s96
      %p108 = scmp.eq.s32.totalorder %s23, 1
      %p109 = por %p107, %p108
      %p111 = scmp.ne.s32.totalorder %s96, %s110
      %p112 = scmp.eq.s32.totalorder %s23, 0
      %p113 = por %p111, %p112
      %s114 = ssub.s32 %s17, %s24
      %p115 = scmp.eq.s32.totalorder %s114, 0
      %s117 = sadd.s32 %s116, 1
      %s118 = scalar_select %p115, %s116, %s117
      %p121 = pneg %p115
      %p122 = scmp.eq.s32.totalorder %s17, 1
      %p123 = por %p121, %p122
      %p124 = scmp.ne.s32.totalorder %s116, %s119
      %p125 = scmp.eq.s32.totalorder %s17, 0
      %p126 = por %p124, %p125
      %p127 = scmp.ne.s32.totalorder %s116, %s119
      %p128 = scmp.eq.s32.totalorder %s22, 1
      %p129 = por %p127, %p128
      %p130 = scmp.ne.s32.totalorder %s119, %s120
      %p131 = scmp.eq.s32.totalorder %s22, 0
      %p132 = por %p130, %p131
      %p133 = scmp.ne.s32.totalorder %s119, %s120
      %p134 = scmp.eq.s32.totalorder %s23, 1
      %p135 = por %p133, %p134
      %p137 = scmp.ne.s32.totalorder %s120, %s136
      %p138 = scmp.eq.s32.totalorder %s23, 0
      %p139 = por %p137, %p138
      %p140 = scmp.le.s32.totalorder 1, %s17
      %p141 = scmp.lt.s32.totalorder %s17, 3
      %p142 = pnand %p140, %p141
      %p143 = pneg %p142
      // Predicated region
      $region9: #{tpu_custom_call.1} parent=5 // pred_check
        _
      $region10: #{tpu_custom_call.1} parent=5 // pred_check_branch
        %145 = sbr.rel (%p142) target = $region12
      $region11: #{tpu_custom_call.1} parent=5 // pred_region
        %s146 = ssub.s32 %s17, 1
        // Predicated region
        $region13: #{tpu_custom_call.1} parent=11 // pred_check
          %p147 = pneg %p64
        $region14: #{tpu_custom_call.1} parent=11 // pred_check_branch
          %149 = sbr.rel (%p147) target = $region16
        $region15: #{tpu_custom_call.1} parent=11 // pred_region
          %s151 = ssub.s32 1536, 1536
          %152 = vsyncadd [#allocation6], %s151
          %s153 = sshll.u32 [#allocation5], 4
          %s154 = int_to_ptr.vmem [resolvable:$true] %s153
          %159 = dma.hbm_to_vmem [thread:$0]  %s1, 1536, %s154, [#allocation6], 384, 384, 24
        $region16: #{tpu_custom_call.1} parent=11 // pred_fallthru
          _
        // Predicated region
        $region17: #{tpu_custom_call.1} parent=11 // pred_check
          %p160 = pneg %p85
        $region18: #{tpu_custom_call.1} parent=11 // pred_check_branch
          %162 = sbr.rel (%p160) target = $region20
        $region19: #{tpu_custom_call.1} parent=11 // pred_region
          %s164 = ssub.s32 2048, 2048
          %165 = vsyncadd [#allocation6], %s164
          %s166 = sshll.u32 [#allocation7], 4
          %s167 = int_to_ptr.vmem [resolvable:$true] %s166
          %172 = dma.hbm_to_vmem [thread:$0]  %s2, 2048, %s167, [#allocation6], 128, 128, 8
        $region20: #{tpu_custom_call.1} parent=11 // pred_fallthru
          _
        // Predicated region
        $region21: #{tpu_custom_call.1} parent=11 // pred_check
          %p173 = pneg %p106
        $region22: #{tpu_custom_call.1} parent=11 // pred_check_branch
          %175 = sbr.rel (%p173) target = $region24
        $region23: #{tpu_custom_call.1} parent=11 // pred_region
          _
        $region24: #{tpu_custom_call.1} parent=11 // pred_fallthru
          _
      $region12: #{tpu_custom_call.1} parent=5 // pred_fallthru
        _
      %p176 = scmp.lt.s32.totalorder %s17, 2
      // Predicated region
      $region25: #{tpu_custom_call.1} parent=5 // pred_check
        %p177 = pneg %p176
      $region26: #{tpu_custom_call.1} parent=5 // pred_check_branch
        %179 = sbr.rel (%p177) target = $region28
      $region27: #{tpu_custom_call.1} parent=5 // pred_region
        // Predicated region
        $region29: #{tpu_custom_call.1} parent=27 // pred_check
          %p180 = pneg %p37
        $region30: #{tpu_custom_call.1} parent=27 // pred_check_branch
          %182 = sbr.rel (%p180) target = $region32
        $region31: #{tpu_custom_call.1} parent=27 // pred_region
          %s183 = sand.u32 %s27, 1
          %s184 = scalar_lea.sflag [#allocation3], %s183
          %s185 = sand.u32 %s27, 1
          %s186 = smul.addr %s185, 8
          %s187 = scalar_lea.vmem [#allocation2], %s186
          %s189 = ssub.s32 128, 128
          %190 = vsyncadd %s184, %s189
          %s191 = smul.addr %s17, 128
          %s192 = scalar_lea.hbm %s0, %s191
          %s194 = sshll.u32 %s187, 4
          %s195 = int_to_ptr.vmem [resolvable:$true] %s194
          %197 = dma.hbm_to_vmem [thread:$0]  %s192, 128, %s195, %s184
        $region32: #{tpu_custom_call.1} parent=27 // pred_fallthru
          _
      $region28: #{tpu_custom_call.1} parent=5 // pred_fallthru
        _
      %p198 = scmp.le.s32.totalorder 1, %s17
      %p199 = scmp.lt.s32.totalorder %s17, 3
      %p200 = pnand %p198, %p199
      %p201 = pneg %p200
      // Predicated region
      $region33: #{tpu_custom_call.1} parent=5 // pred_check
        _
      $region34: #{tpu_custom_call.1} parent=5 // pred_check_branch
        %203 = sbr.rel (%p200) target = $region36
      $region35: #{tpu_custom_call.1} parent=5 // pred_region
        %s204 = ssub.s32 %s17, 1
        %s205 = sand.u32 %s30, 1
        %s206 = scalar_lea.sflag [#allocation3], %s205
        %s207 = sand.u32 %s30, 1
        %s208 = smul.addr %s207, 8
        %s209 = scalar_lea.vmem [#allocation2], %s208
        // Predicated region
        $region37: #{tpu_custom_call.1} parent=35 // pred_check
          %p210 = pneg %p43
        $region38: #{tpu_custom_call.1} parent=35 // pred_check_branch
          %212 = sbr.rel (%p210) target = $region40
        $region39: #{tpu_custom_call.1} parent=35 // pred_region
          %213 = dma.done %s206, 128
        $region40: #{tpu_custom_call.1} parent=35 // pred_fallthru
          _
        // Predicated region
        $region41: #{tpu_custom_call.1} parent=35 // pred_check
          %p214 = pneg %p64
        $region42: #{tpu_custom_call.1} parent=35 // pred_check_branch
          %216 = sbr.rel (%p214) target = $region44
        $region43: #{tpu_custom_call.1} parent=35 // pred_region
          %217 = dma.done [#allocation6], 1536
        $region44: #{tpu_custom_call.1} parent=35 // pred_fallthru
          _
        // Predicated region
        $region45: #{tpu_custom_call.1} parent=35 // pred_check
          %p218 = pneg %p85
        $region46: #{tpu_custom_call.1} parent=35 // pred_check_branch
          %220 = sbr.rel (%p218) target = $region48
        $region47: #{tpu_custom_call.1} parent=35 // pred_region
          %221 = dma.done [#allocation6], 2048
        $region48: #{tpu_custom_call.1} parent=35 // pred_fallthru
          _
        %s222 = sand.u32 %s30, 1
        %s223 = scalar_lea.sflag [#allocation3], %s222
        %s224 = sand.u32 %s30, 1
        %s225 = smul.addr %s224, 8
        %s226 = scalar_lea.vmem [#allocation2], %s225
        %p227 = pneg %p43
        %p228 = pneg %p40
        %p229 = pneg %p64
        %p230 = pneg %p61
        %p231 = pneg %p85
        %p232 = pneg %p82
        %p233 = pneg %p106
        %p234 = pneg %p103
        %p235 = pneg %p132
        %p236 = pneg %p129
        %s237 = sand.u32 %s119, 1
        %s238 = scalar_lea.sflag [#allocation4], %s237
        %s239 = sand.u32 %s119, 1
        %s240 = smul.addr %s239, 8
        %s241 = scalar_lea.vmem [#allocation8], %s240
        %v242 = vld [vmem:[%s209] sm:$0xff]
        %v243 = vld [vmem:[#allocation5] sm:$0xff]
        %v244 = vld [vmem:[#allocation5 + $0x8] sm:$0xff]
        %v245 = vld [vmem:[#allocation5 + $0x10] sm:$0xff]
        %v246 = vld [vmem:[#allocation5 + $0x18] sm:$0xff]
        %v247 = vld [vmem:[#allocation5 + $0x20] sm:$0xff]
        %v248 = vld [vmem:[#allocation5 + $0x28] sm:$0xff]
        %v249 = vld [vmem:[#allocation5 + $0x30] sm:$0xff]
        %v250 = vld [vmem:[#allocation5 + $0x38] sm:$0xff]
        %v251 = vld [vmem:[#allocation5 + $0x40] sm:$0xff]
        %v252 = vld [vmem:[#allocation5 + $0x48] sm:$0xff]
        %v253 = vld [vmem:[#allocation5 + $0x50] sm:$0xff]
        %v254 = vld [vmem:[#allocation5 + $0x58] sm:$0xff]
        %vm255 = vcmask 261120
        %v257 = vsel %vm255, %v242, 0
        %259 = vmatprep.subr.mxu0 0.0
        %260 = vmatpush1.msra.mxu0 0.0
        %261 = vmatprep.subr.mxu0 0.0
        %262 = vmatpush1.msra.mxu0 0.0
        %263 = vmatprep.subr.mxu0 0.0
        %264 = vmatpush1.msra.mxu0 0.0
        %265 = vmatprep.subr.mxu0 0.0
        %266 = vmatpush1.msra.mxu0 0.0
        %267 = vmatprep.subr.mxu0 0.0
        %268 = vmatpush1.msra.mxu0 0.0
        %269 = vmatprep.subr.mxu0 0.0
        %270 = vmatpush1.msra.mxu0 0.0
        %271 = vmatprep.subr.mxu0 0.0
        %272 = vmatpush1.msra.mxu0 0.0
        %273 = vmatprep.subr.mxu0 0.0
        %274 = vmatpush1.msra.mxu0 0.0
        %275 = vmatprep.subr.mxu0 0.0
        %276 = vmatpush1.msra.mxu0 0.0
        %277 = vmatprep.subr.mxu0 0.0
        %278 = vmatpush1.msra.mxu0 0.0
        %279 = vmatprep.subr.mxu0 0.0
        %280 = vmatpush1.msra.mxu0 0.0
        %281 = vmatprep.subr.mxu0 0.0
        %282 = vmatpush1.msra.mxu0 0.0
        %283 = vmatprep.subr.mxu0 %v253
        %284 = vmatpush1.msra.mxu0 %v252
        %285 = vmatprep.subr.mxu0 %v250
        %286 = vmatpush1.msra.mxu0 %v249
        %287 = vmatprep.subr.mxu0 %v247
        %288 = vmatpush1.msra.mxu0 %v246
        %289 = vmatprep.subr.mxu0 %v244
        %290 = vmatpush1.msra.mxu0 %v243
        %291 = vmatprep.subr.mxu0 0.0
        %292 = vmatpush2.msra.mxu0 0.0
        %293 = vmatprep.subr.mxu0 0.0
        %294 = vmatpush2.msra.mxu0 0.0
        %295 = vmatprep.subr.mxu0 0.0
        %296 = vmatpush2.msra.mxu0 0.0
        %297 = vmatprep.subr.mxu0 0.0
        %298 = vmatpush2.msra.mxu0 0.0
        %299 = vmatprep.subr.mxu0 0.0
        %300 = vmatpush2.msra.mxu0 0.0
        %301 = vmatprep.subr.mxu0 0.0
        %302 = vmatpush2.msra.mxu0 0.0
        %303 = vmatprep.subr.mxu0 0.0
        %304 = vmatpush2.msra.mxu0 0.0
        %305 = vmatprep.subr.mxu0 0.0
        %306 = vmatpush2.msra.mxu0 0.0
        %307 = vmatprep.subr.mxu0 0.0
        %308 = vmatpush2.msra.mxu0 0.0
        %309 = vmatprep.subr.mxu0 0.0
        %310 = vmatpush2.msra.mxu0 0.0
        %311 = vmatprep.subr.mxu0 0.0
        %312 = vmatpush2.msra.mxu0 0.0
        %313 = vmatprep.subr.mxu0 0.0
        %314 = vmatpush2.msra.mxu0 0.0
        %315 = vmatprep.subr.mxu0 0.0
        %316 = vmatpush2.msra.mxu0 0.0
        %317 = vmatprep.subr.mxu0 0.0
        %318 = vmatpush2.msra.mxu0 0.0
        %319 = vmatprep.subr.mxu0 0.0
        %320 = vmatpush2.msra.mxu0 0.0
        %321 = vmatprep.subr.mxu0 0.0
        %322 = vmatpush2.msra.mxu0 0.0
        %323 = vmatprep.mubr.f32.mxu0 0.0
        %324 = vmatmul.mubr.f32.gmra.mxu0 %v257
        %v325 = vpop.f32.mrf.mxu0
        %v326 = vadd.f32 0.0, %v325
        %v327 = vpop.f32.mrf.mxu0
        %v328 = vadd.f32 0.0, %v327
        %329 = vdwg.mxu0
        %330 = vmatprep.subr.mxu0 0.0
        %331 = vmatpush1.msra.mxu0 0.0
        %332 = vmatprep.subr.mxu0 0.0
        %333 = vmatpush1.msra.mxu0 0.0
        %334 = vmatprep.subr.mxu0 0.0
        %335 = vmatpush1.msra.mxu0 0.0
        %336 = vmatprep.subr.mxu0 0.0
        %337 = vmatpush1.msra.mxu0 0.0
        %338 = vmatprep.subr.mxu0 0.0
        %339 = vmatpush1.msra.mxu0 0.0
        %340 = vmatprep.subr.mxu0 0.0
        %341 = vmatpush1.msra.mxu0 0.0
        %342 = vmatprep.subr.mxu0 0.0
        %343 = vmatpush1.msra.mxu0 0.0
        %344 = vmatprep.subr.mxu0 0.0
        %345 = vmatpush1.msra.mxu0 0.0
        %346 = vmatprep.subr.mxu0 0.0
        %347 = vmatpush1.msra.mxu0 0.0
        %348 = vmatprep.subr.mxu0 0.0
        %349 = vmatpush1.msra.mxu0 0.0
        %350 = vmatprep.subr.mxu0 0.0
        %351 = vmatpush1.msra.mxu0 0.0
        %352 = vmatprep.subr.mxu0 0.0
        %353 = vmatpush1.msra.mxu0 0.0
        %354 = vmatprep.subr.mxu0 0.0
        %355 = vmatpush1.msra.mxu0 %v254
        %356 = vmatprep.subr.mxu0 0.0
        %357 = vmatpush1.msra.mxu0 %v251
        %358 = vmatprep.subr.mxu0 0.0
        %359 = vmatpush1.msra.mxu0 %v248
        %360 = vmatprep.subr.mxu0 0.0
        %361 = vmatpush1.msra.mxu0 %v245
        %362 = vmatprep.subr.mxu0 0.0
        %363 = vmatpush2.msra.mxu0 0.0
        %364 = vmatprep.subr.mxu0 0.0
        %365 = vmatpush2.msra.mxu0 0.0
        %366 = vmatprep.subr.mxu0 0.0
        %367 = vmatpush2.msra.mxu0 0.0
        %368 = vmatprep.subr.mxu0 0.0
        %369 = vmatpush2.msra.mxu0 0.0
        %370 = vmatprep.subr.mxu0 0.0
        %371 = vmatpush2.msra.mxu0 0.0
        %372 = vmatprep.subr.mxu0 0.0
        %373 = vmatpush2.msra.mxu0 0.0
        %374 = vmatprep.subr.mxu0 0.0
        %375 = vmatpush2.msra.mxu0 0.0
        %376 = vmatprep.subr.mxu0 0.0
        %377 = vmatpush2.msra.mxu0 0.0
        %378 = vmatprep.subr.mxu0 0.0
        %379 = vmatpush2.msra.mxu0 0.0
        %380 = vmatprep.subr.mxu0 0.0
        %381 = vmatpush2.msra.mxu0 0.0
        %382 = vmatprep.subr.mxu0 0.0
        %383 = vmatpush2.msra.mxu0 0.0
        %384 = vmatprep.subr.mxu0 0.0
        %385 = vmatpush2.msra.mxu0 0.0
        %386 = vmatprep.subr.mxu0 0.0
        %387 = vmatpush2.msra.mxu0 0.0
        %388 = vmatprep.subr.mxu0 0.0
        %389 = vmatpush2.msra.mxu0 0.0
        %390 = vmatprep.subr.mxu0 0.0
        %391 = vmatpush2.msra.mxu0 0.0
        %392 = vmatprep.subr.mxu0 0.0
        %393 = vmatpush2.msra.mxu0 0.0
        %394 = vmatprep.mubr.f32.mxu0 0.0
        %395 = vmatmul.mubr.f32.gmra.mxu0 %v257
        %v396 = vpop.f32.mrf.mxu0
        %v397 = vadd.f32 0.0, %v396
        %v398 = vpop.f32.mrf.mxu0
        %399 = vdwg.mxu0
        %vm400 = vcmask 130048
        %v402 = vsel %vm400, %v326, 0
        %v405 = vsel %vm400, %v328, 0
        %407 = vmatprep.subr.mxu0 0.0
        %408 = vmatpush1.xpose.msra.mxu0 0.0
        %409 = vmatprep.subr.mxu0 0.0
        %410 = vmatpush1.xpose.msra.mxu0 0.0
        %411 = vmatprep.subr.mxu0 0.0
        %412 = vmatpush1.xpose.msra.mxu0 0.0
        %413 = vmatprep.subr.mxu0 0.0
        %414 = vmatpush1.xpose.msra.mxu0 0.0
        %415 = vmatprep.subr.mxu0 0.0
        %416 = vmatpush1.xpose.msra.mxu0 0.0
        %417 = vmatprep.subr.mxu0 0.0
        %418 = vmatpush1.xpose.msra.mxu0 0.0
        %419 = vmatprep.subr.mxu0 0.0
        %420 = vmatpush1.xpose.msra.mxu0 0.0
        %421 = vmatprep.subr.mxu0 0.0
        %422 = vmatpush1.xpose.msra.mxu0 0.0
        %423 = vmatprep.subr.mxu0 0.0
        %424 = vmatpush1.xpose.msra.mxu0 0.0
        %425 = vmatprep.subr.mxu0 0.0
        %426 = vmatpush1.xpose.msra.mxu0 0.0
        %427 = vmatprep.subr.mxu0 0.0
        %428 = vmatpush1.xpose.msra.mxu0 0.0
        %429 = vmatprep.subr.mxu0 0.0
        %430 = vmatpush1.xpose.msra.mxu0 0.0
        %431 = vmatprep.subr.mxu0 0.0
        %432 = vmatpush1.xpose.msra.mxu0 0.0
        %433 = vmatprep.subr.mxu0 0.0
        %434 = vmatpush1.xpose.msra.mxu0 0.0
        %435 = vmatprep.subr.mxu0 0.0
        %436 = vmatpush1.xpose.msra.mxu0 0.0
        %437 = vmatprep.subr.mxu0 0.0
        %438 = vmatpush1.xpose.msra.mxu0 %v405
        %439 = vmatprep.subr.mxu0 0.0
        %440 = vmatpush2.xpose.msra.mxu0 0.0
        %441 = vmatprep.subr.mxu0 0.0
        %442 = vmatpush2.xpose.msra.mxu0 0.0
        %443 = vmatprep.subr.mxu0 0.0
        %444 = vmatpush2.xpose.msra.mxu0 0.0
        %445 = vmatprep.subr.mxu0 0.0
        %446 = vmatpush2.xpose.msra.mxu0 0.0
        %447 = vmatprep.subr.mxu0 0.0
        %448 = vmatpush2.xpose.msra.mxu0 0.0
        %449 = vmatprep.subr.mxu0 0.0
        %450 = vmatpush2.xpose.msra.mxu0 0.0
        %451 = vmatprep.subr.mxu0 0.0
        %452 = vmatpush2.xpose.msra.mxu0 0.0
        %453 = vmatprep.subr.mxu0 0.0
        %454 = vmatpush2.xpose.msra.mxu0 0.0
        %455 = vmatprep.subr.mxu0 0.0
        %456 = vmatpush2.xpose.msra.mxu0 0.0
        %457 = vmatprep.subr.mxu0 0.0
        %458 = vmatpush2.xpose.msra.mxu0 0.0
        %459 = vmatprep.subr.mxu0 0.0
        %460 = vmatpush2.xpose.msra.mxu0 0.0
        %461 = vmatprep.subr.mxu0 0.0
        %462 = vmatpush2.xpose.msra.mxu0 0.0
        %463 = vmatprep.subr.mxu0 0.0
        %464 = vmatpush2.xpose.msra.mxu0 0.0
        %465 = vmatprep.subr.mxu0 0.0
        %466 = vmatpush2.xpose.msra.mxu0 0.0
        %467 = vmatprep.subr.mxu0 0.0
        %468 = vmatpush2.xpose.msra.mxu0 0.0
        %469 = vmatprep.subr.mxu0 0.0
        %470 = vmatpush2.xpose.msra.mxu0 0.0
        %471 = vmatprep.mubr.f32.mxu0 0.0
        %472 = vmatmul.mubr.f32.gmra.mxu0 %v402
        %v473 = vpop.f32.mrf.mxu0
        %v474 = vadd.f32 0.0, %v473
        %v475 = vpop.f32.mrf.mxu0
        %476 = vdwg.mxu0
        %v477 = vmul.f32 %v474, 0.35355338
        %vm478 = vcmask 64512
        %v479 = vsel %vm478, %v477, -inf
        %480 = vmax.xlane.f32.xlu0 %v479
        %v481 = vpop.xlane.xlu0 %480
        %v482 = vsub.f32 %v477, %v481
        %v483 = vmul.f32 %v482, 1.442695
        %v484 = vpow.pop %v483
        %v485 = vsel %vm478, %v484, 0.0
        %486 = vadd.xlane.f32.xlu0 %v485
        %v487 = vpop.xlane.xlu0 %486
        %v488 = vrcp.pop %v487
        %v489 = vmul.f32 %v484, %v488
        %v491 = vsel %vm478, %v489, 0
        %493 = vmatprep.subr.mxu0 0.0
        %494 = vmatpush1.msra.mxu0 0.0
        %495 = vmatprep.subr.mxu0 0.0
        %496 = vmatpush1.msra.mxu0 0.0
        %497 = vmatprep.subr.mxu0 0.0
        %498 = vmatpush1.msra.mxu0 0.0
        %499 = vmatprep.subr.mxu0 0.0
        %500 = vmatpush1.msra.mxu0 0.0
        %501 = vmatprep.subr.mxu0 0.0
        %502 = vmatpush1.msra.mxu0 0.0
        %503 = vmatprep.subr.mxu0 0.0
        %504 = vmatpush1.msra.mxu0 0.0
        %505 = vmatprep.subr.mxu0 0.0
        %506 = vmatpush1.msra.mxu0 0.0
        %507 = vmatprep.subr.mxu0 0.0
        %508 = vmatpush1.msra.mxu0 0.0
        %509 = vmatprep.subr.mxu0 0.0
        %510 = vmatpush1.msra.mxu0 0.0
        %511 = vmatprep.subr.mxu0 0.0
        %512 = vmatpush1.msra.mxu0 0.0
        %513 = vmatprep.subr.mxu0 0.0
        %514 = vmatpush1.msra.mxu0 0.0
        %515 = vmatprep.subr.mxu0 0.0
        %516 = vmatpush1.msra.mxu0 0.0
        %517 = vmatprep.subr.mxu0 0.0
        %518 = vmatpush1.msra.mxu0 0.0
        %519 = vmatprep.subr.mxu0 0.0
        %520 = vmatpush1.msra.mxu0 0.0
        %521 = vmatprep.subr.mxu0 0.0
        %522 = vmatpush1.msra.mxu0 0.0
        %523 = vmatprep.subr.mxu0 0.0
        %524 = vmatpush1.msra.mxu0 %v397
        %525 = vmatprep.subr.mxu0 0.0
        %526 = vmatpush2.msra.mxu0 0.0
        %527 = vmatprep.subr.mxu0 0.0
        %528 = vmatpush2.msra.mxu0 0.0
        %529 = vmatprep.subr.mxu0 0.0
        %530 = vmatpush2.msra.mxu0 0.0
        %531 = vmatprep.subr.mxu0 0.0
        %532 = vmatpush2.msra.mxu0 0.0
        %533 = vmatprep.subr.mxu0 0.0
        %534 = vmatpush2.msra.mxu0 0.0
        %535 = vmatprep.subr.mxu0 0.0
        %536 = vmatpush2.msra.mxu0 0.0
        %537 = vmatprep.subr.mxu0 0.0
        %538 = vmatpush2.msra.mxu0 0.0
        %539 = vmatprep.subr.mxu0 0.0
        %540 = vmatpush2.msra.mxu0 0.0
        %541 = vmatprep.subr.mxu0 0.0
        %542 = vmatpush2.msra.mxu0 0.0
        %543 = vmatprep.subr.mxu0 0.0
        %544 = vmatpush2.msra.mxu0 0.0
        %545 = vmatprep.subr.mxu0 0.0
        %546 = vmatpush2.msra.mxu0 0.0
        %547 = vmatprep.subr.mxu0 0.0
        %548 = vmatpush2.msra.mxu0 0.0
        %549 = vmatprep.subr.mxu0 0.0
        %550 = vmatpush2.msra.mxu0 0.0
        %551 = vmatprep.subr.mxu0 0.0
        %552 = vmatpush2.msra.mxu0 0.0
        %553 = vmatprep.subr.mxu0 0.0
        %554 = vmatpush2.msra.mxu0 0.0
        %555 = vmatprep.subr.mxu0 0.0
        %556 = vmatpush2.msra.mxu0 0.0
        %557 = vmatprep.mubr.f32.mxu0 0.0
        %558 = vmatmul.mubr.f32.gmra.mxu0 %v491
        %v559 = vpop.f32.mrf.mxu0
        %v560 = vadd.f32 0.0, %v559
        %v561 = vpop.f32.mrf.mxu0
        %562 = vdwg.mxu0
        %563 = vrot.lane.b32.xlu0 %v326, 112
        %v564 = vpop.permute.xlu0 %563
        %565 = vrot.lane.b32.xlu0 %v328, 112
        %v566 = vpop.permute.xlu0 %565
        %v567 = vsel %vm400, %v564, 0
        %v569 = vsel %vm400, %v566, 0
        %571 = vmatprep.subr.mxu0 0.0
        %572 = vmatpush1.xpose.msra.mxu0 0.0
        %573 = vmatprep.subr.mxu0 0.0
        %574 = vmatpush1.xpose.msra.mxu0 0.0
        %575 = vmatprep.subr.mxu0 0.0
        %576 = vmatpush1.xpose.msra.mxu0 0.0
        %577 = vmatprep.subr.mxu0 0.0
        %578 = vmatpush1.xpose.msra.mxu0 0.0
        %579 = vmatprep.subr.mxu0 0.0
        %580 = vmatpush1.xpose.msra.mxu0 0.0
        %581 = vmatprep.subr.mxu0 0.0
        %582 = vmatpush1.xpose.msra.mxu0 0.0
        %583 = vmatprep.subr.mxu0 0.0
        %584 = vmatpush1.xpose.msra.mxu0 0.0
        %585 = vmatprep.subr.mxu0 0.0
        %586 = vmatpush1.xpose.msra.mxu0 0.0
        %587 = vmatprep.subr.mxu0 0.0
        %588 = vmatpush1.xpose.msra.mxu0 0.0
        %589 = vmatprep.subr.mxu0 0.0
        %590 = vmatpush1.xpose.msra.mxu0 0.0
        %591 = vmatprep.subr.mxu0 0.0
        %592 = vmatpush1.xpose.msra.mxu0 0.0
        %593 = vmatprep.subr.mxu0 0.0
        %594 = vmatpush1.xpose.msra.mxu0 0.0
        %595 = vmatprep.subr.mxu0 0.0
        %596 = vmatpush1.xpose.msra.mxu0 0.0
        %597 = vmatprep.subr.mxu0 0.0
        %598 = vmatpush1.xpose.msra.mxu0 0.0
        %599 = vmatprep.subr.mxu0 0.0
        %600 = vmatpush1.xpose.msra.mxu0 0.0
        %601 = vmatprep.subr.mxu0 0.0
        %602 = vmatpush1.xpose.msra.mxu0 %v569
        %603 = vmatprep.subr.mxu0 0.0
        %604 = vmatpush2.xpose.msra.mxu0 0.0
        %605 = vmatprep.subr.mxu0 0.0
        %606 = vmatpush2.xpose.msra.mxu0 0.0
        %607 = vmatprep.subr.mxu0 0.0
        %608 = vmatpush2.xpose.msra.mxu0 0.0
        %609 = vmatprep.subr.mxu0 0.0
        %610 = vmatpush2.xpose.msra.mxu0 0.0
        %611 = vmatprep.subr.mxu0 0.0
        %612 = vmatpush2.xpose.msra.mxu0 0.0
        %613 = vmatprep.subr.mxu0 0.0
        %614 = vmatpush2.xpose.msra.mxu0 0.0
        %615 = vmatprep.subr.mxu0 0.0
        %616 = vmatpush2.xpose.msra.mxu0 0.0
        %617 = vmatprep.subr.mxu0 0.0
        %618 = vmatpush2.xpose.msra.mxu0 0.0
        %619 = vmatprep.subr.mxu0 0.0
        %620 = vmatpush2.xpose.msra.mxu0 0.0
        %621 = vmatprep.subr.mxu0 0.0
        %622 = vmatpush2.xpose.msra.mxu0 0.0
        %623 = vmatprep.subr.mxu0 0.0
        %624 = vmatpush2.xpose.msra.mxu0 0.0
        %625 = vmatprep.subr.mxu0 0.0
        %626 = vmatpush2.xpose.msra.mxu0 0.0
        %627 = vmatprep.subr.mxu0 0.0
        %628 = vmatpush2.xpose.msra.mxu0 0.0
        %629 = vmatprep.subr.mxu0 0.0
        %630 = vmatpush2.xpose.msra.mxu0 0.0
        %631 = vmatprep.subr.mxu0 0.0
        %632 = vmatpush2.xpose.msra.mxu0 0.0
        %633 = vmatprep.subr.mxu0 0.0
        %634 = vmatpush2.xpose.msra.mxu0 0.0
        %635 = vmatprep.mubr.f32.mxu0 0.0
        %636 = vmatmul.mubr.f32.gmra.mxu0 %v567
        %v637 = vpop.f32.mrf.mxu0
        %v638 = vadd.f32 0.0, %v637
        %v639 = vpop.f32.mrf.mxu0
        %640 = vdwg.mxu0
        %v641 = vmul.f32 %v638, 0.35355338
        %v642 = vsel %vm478, %v641, -inf
        %643 = vmax.xlane.f32.xlu0 %v642
        %v644 = vpop.xlane.xlu0 %643
        %v645 = vsub.f32 %v641, %v644
        %v646 = vmul.f32 %v645, 1.442695
        %v647 = vpow.pop %v646
        %v648 = vsel %vm478, %v647, 0.0
        %649 = vadd.xlane.f32.xlu0 %v648
        %v650 = vpop.xlane.xlu0 %649
        %v651 = vrcp.pop %v650
        %v652 = vmul.f32 %v647, %v651
        %654 = vrot.lane.b32.xlu0 %v397, 112
        %v655 = vpop.permute.xlu0 %654
        %v658 = vsel %vm478, %v652, 0
        %660 = vmatprep.subr.mxu0 0.0
        %661 = vmatpush1.msra.mxu0 0.0
        %662 = vmatprep.subr.mxu0 0.0
        %663 = vmatpush1.msra.mxu0 0.0
        %664 = vmatprep.subr.mxu0 0.0
        %665 = vmatpush1.msra.mxu0 0.0
        %666 = vmatprep.subr.mxu0 0.0
        %667 = vmatpush1.msra.mxu0 0.0
        %668 = vmatprep.subr.mxu0 0.0
        %669 = vmatpush1.msra.mxu0 0.0
        %670 = vmatprep.subr.mxu0 0.0
        %671 = vmatpush1.msra.mxu0 0.0
        %672 = vmatprep.subr.mxu0 0.0
        %673 = vmatpush1.msra.mxu0 0.0
        %674 = vmatprep.subr.mxu0 0.0
        %675 = vmatpush1.msra.mxu0 0.0
        %676 = vmatprep.subr.mxu0 0.0
        %677 = vmatpush1.msra.mxu0 0.0
        %678 = vmatprep.subr.mxu0 0.0
        %679 = vmatpush1.msra.mxu0 0.0
        %680 = vmatprep.subr.mxu0 0.0
        %681 = vmatpush1.msra.mxu0 0.0
        %682 = vmatprep.subr.mxu0 0.0
        %683 = vmatpush1.msra.mxu0 0.0
        %684 = vmatprep.subr.mxu0 0.0
        %685 = vmatpush1.msra.mxu0 0.0
        %686 = vmatprep.subr.mxu0 0.0
        %687 = vmatpush1.msra.mxu0 0.0
        %688 = vmatprep.subr.mxu0 0.0
        %689 = vmatpush1.msra.mxu0 0.0
        %690 = vmatprep.subr.mxu0 0.0
        %691 = vmatpush1.msra.mxu0 %v655
        %692 = vmatprep.subr.mxu0 0.0
        %693 = vmatpush2.msra.mxu0 0.0
        %694 = vmatprep.subr.mxu0 0.0
        %695 = vmatpush2.msra.mxu0 0.0
        %696 = vmatprep.subr.mxu0 0.0
        %697 = vmatpush2.msra.mxu0 0.0
        %698 = vmatprep.subr.mxu0 0.0
        %699 = vmatpush2.msra.mxu0 0.0
        %700 = vmatprep.subr.mxu0 0.0
        %701 = vmatpush2.msra.mxu0 0.0
        %702 = vmatprep.subr.mxu0 0.0
        %703 = vmatpush2.msra.mxu0 0.0
        %704 = vmatprep.subr.mxu0 0.0
        %705 = vmatpush2.msra.mxu0 0.0
        %706 = vmatprep.subr.mxu0 0.0
        %707 = vmatpush2.msra.mxu0 0.0
        %708 = vmatprep.subr.mxu0 0.0
        %709 = vmatpush2.msra.mxu0 0.0
        %710 = vmatprep.subr.mxu0 0.0
        %711 = vmatpush2.msra.mxu0 0.0
        %712 = vmatprep.subr.mxu0 0.0
        %713 = vmatpush2.msra.mxu0 0.0
        %714 = vmatprep.subr.mxu0 0.0
        %715 = vmatpush2.msra.mxu0 0.0
        %716 = vmatprep.subr.mxu0 0.0
        %717 = vmatpush2.msra.mxu0 0.0
        %718 = vmatprep.subr.mxu0 0.0
        %719 = vmatpush2.msra.mxu0 0.0
        %720 = vmatprep.subr.mxu0 0.0
        %721 = vmatpush2.msra.mxu0 0.0
        %722 = vmatprep.subr.mxu0 0.0
        %723 = vmatpush2.msra.mxu0 0.0
        %724 = vmatprep.mubr.f32.mxu0 0.0
        %725 = vmatmul.mubr.f32.gmra.mxu0 %v658
        %v726 = vpop.f32.mrf.mxu0
        %v727 = vadd.f32 0.0, %v726
        %v728 = vpop.f32.mrf.mxu0
        %729 = vdwg.mxu0
        %730 = vrot.lane.b32.xlu0 %v326, 96
        %v731 = vpop.permute.xlu0 %730
        %732 = vrot.lane.b32.xlu0 %v328, 96
        %v733 = vpop.permute.xlu0 %732
        %v734 = vsel %vm400, %v731, 0
        %v736 = vsel %vm400, %v733, 0
        %738 = vmatprep.subr.mxu0 0.0
        %739 = vmatpush1.xpose.msra.mxu0 0.0
        %740 = vmatprep.subr.mxu0 0.0
        %741 = vmatpush1.xpose.msra.mxu0 0.0
        %742 = vmatprep.subr.mxu0 0.0
        %743 = vmatpush1.xpose.msra.mxu0 0.0
        %744 = vmatprep.subr.mxu0 0.0
        %745 = vmatpush1.xpose.msra.mxu0 0.0
        %746 = vmatprep.subr.mxu0 0.0
        %747 = vmatpush1.xpose.msra.mxu0 0.0
        %748 = vmatprep.subr.mxu0 0.0
        %749 = vmatpush1.xpose.msra.mxu0 0.0
        %750 = vmatprep.subr.mxu0 0.0
        %751 = vmatpush1.xpose.msra.mxu0 0.0
        %752 = vmatprep.subr.mxu0 0.0
        %753 = vmatpush1.xpose.msra.mxu0 0.0
        %754 = vmatprep.subr.mxu0 0.0
        %755 = vmatpush1.xpose.msra.mxu0 0.0
        %756 = vmatprep.subr.mxu0 0.0
        %757 = vmatpush1.xpose.msra.mxu0 0.0
        %758 = vmatprep.subr.mxu0 0.0
        %759 = vmatpush1.xpose.msra.mxu0 0.0
        %760 = vmatprep.subr.mxu0 0.0
        %761 = vmatpush1.xpose.msra.mxu0 0.0
        %762 = vmatprep.subr.mxu0 0.0
        %763 = vmatpush1.xpose.msra.mxu0 0.0
        %764 = vmatprep.subr.mxu0 0.0
        %765 = vmatpush1.xpose.msra.mxu0 0.0
        %766 = vmatprep.subr.mxu0 0.0
        %767 = vmatpush1.xpose.msra.mxu0 0.0
        %768 = vmatprep.subr.mxu0 0.0
        %769 = vmatpush1.xpose.msra.mxu0 %v736
        %770 = vmatprep.subr.mxu0 0.0
        %771 = vmatpush2.xpose.msra.mxu0 0.0
        %772 = vmatprep.subr.mxu0 0.0
        %773 = vmatpush2.xpose.msra.mxu0 0.0
        %774 = vmatprep.subr.mxu0 0.0
        %775 = vmatpush2.xpose.msra.mxu0 0.0
        %776 = vmatprep.subr.mxu0 0.0
        %777 = vmatpush2.xpose.msra.mxu0 0.0
        %778 = vmatprep.subr.mxu0 0.0
        %779 = vmatpush2.xpose.msra.mxu0 0.0
        %780 = vmatprep.subr.mxu0 0.0
        %781 = vmatpush2.xpose.msra.mxu0 0.0
        %782 = vmatprep.subr.mxu0 0.0
        %783 = vmatpush2.xpose.msra.mxu0 0.0
        %784 = vmatprep.subr.mxu0 0.0
        %785 = vmatpush2.xpose.msra.mxu0 0.0
        %786 = vmatprep.subr.mxu0 0.0
        %787 = vmatpush2.xpose.msra.mxu0 0.0
        %788 = vmatprep.subr.mxu0 0.0
        %789 = vmatpush2.xpose.msra.mxu0 0.0
        %790 = vmatprep.subr.mxu0 0.0
        %791 = vmatpush2.xpose.msra.mxu0 0.0
        %792 = vmatprep.subr.mxu0 0.0
        %793 = vmatpush2.xpose.msra.mxu0 0.0
        %794 = vmatprep.subr.mxu0 0.0
        %795 = vmatpush2.xpose.msra.mxu0 0.0
        %796 = vmatprep.subr.mxu0 0.0
        %797 = vmatpush2.xpose.msra.mxu0 0.0
        %798 = vmatprep.subr.mxu0 0.0
        %799 = vmatpush2.xpose.msra.mxu0 0.0
        %800 = vmatprep.subr.mxu0 0.0
        %801 = vmatpush2.xpose.msra.mxu0 0.0
        %802 = vmatprep.mubr.f32.mxu0 0.0
        %803 = vmatmul.mubr.f32.gmra.mxu0 %v734
        %v804 = vpop.f32.mrf.mxu0
        %v805 = vadd.f32 0.0, %v804
        %v806 = vpop.f32.mrf.mxu0
        %807 = vdwg.mxu0
        %v808 = vmul.f32 %v805, 0.35355338
        %v809 = vsel %vm478, %v808, -inf
        %810 = vmax.xlane.f32.xlu0 %v809
        %v811 = vpop.xlane.xlu0 %810
        %v812 = vsub.f32 %v808, %v811
        %v813 = vmul.f32 %v812, 1.442695
        %v814 = vpow.pop %v813
        %v815 = vsel %vm478, %v814, 0.0
        %816 = vadd.xlane.f32.xlu0 %v815
        %v817 = vpop.xlane.xlu0 %816
        %v818 = vrcp.pop %v817
        %v819 = vmul.f32 %v814, %v818
        %820 = vrot.lane.b32.xlu0 %v397, 96
        %v821 = vpop.permute.xlu0 %820
        %v824 = vsel %vm478, %v819, 0
        %826 = vmatprep.subr.mxu0 0.0
        %827 = vmatpush1.msra.mxu0 0.0
        %828 = vmatprep.subr.mxu0 0.0
        %829 = vmatpush1.msra.mxu0 0.0
        %830 = vmatprep.subr.mxu0 0.0
        %831 = vmatpush1.msra.mxu0 0.0
        %832 = vmatprep.subr.mxu0 0.0
        %833 = vmatpush1.msra.mxu0 0.0
        %834 = vmatprep.subr.mxu0 0.0
        %835 = vmatpush1.msra.mxu0 0.0
        %836 = vmatprep.subr.mxu0 0.0
        %837 = vmatpush1.msra.mxu0 0.0
        %838 = vmatprep.subr.mxu0 0.0
        %839 = vmatpush1.msra.mxu0 0.0
        %840 = vmatprep.subr.mxu0 0.0
        %841 = vmatpush1.msra.mxu0 0.0
        %842 = vmatprep.subr.mxu0 0.0
        %843 = vmatpush1.msra.mxu0 0.0
        %844 = vmatprep.subr.mxu0 0.0
        %845 = vmatpush1.msra.mxu0 0.0
        %846 = vmatprep.subr.mxu0 0.0
        %847 = vmatpush1.msra.mxu0 0.0
        %848 = vmatprep.subr.mxu0 0.0
        %849 = vmatpush1.msra.mxu0 0.0
        %850 = vmatprep.subr.mxu0 0.0
        %851 = vmatpush1.msra.mxu0 0.0
        %852 = vmatprep.subr.mxu0 0.0
        %853 = vmatpush1.msra.mxu0 0.0
        %854 = vmatprep.subr.mxu0 0.0
        %855 = vmatpush1.msra.mxu0 0.0
        %856 = vmatprep.subr.mxu0 0.0
        %857 = vmatpush1.msra.mxu0 %v821
        %858 = vmatprep.subr.mxu0 0.0
        %859 = vmatpush2.msra.mxu0 0.0
        %860 = vmatprep.subr.mxu0 0.0
        %861 = vmatpush2.msra.mxu0 0.0
        %862 = vmatprep.subr.mxu0 0.0
        %863 = vmatpush2.msra.mxu0 0.0
        %864 = vmatprep.subr.mxu0 0.0
        %865 = vmatpush2.msra.mxu0 0.0
        %866 = vmatprep.subr.mxu0 0.0
        %867 = vmatpush2.msra.mxu0 0.0
        %868 = vmatprep.subr.mxu0 0.0
        %869 = vmatpush2.msra.mxu0 0.0
        %870 = vmatprep.subr.mxu0 0.0
        %871 = vmatpush2.msra.mxu0 0.0
        %872 = vmatprep.subr.mxu0 0.0
        %873 = vmatpush2.msra.mxu0 0.0
        %874 = vmatprep.subr.mxu0 0.0
        %875 = vmatpush2.msra.mxu0 0.0
        %876 = vmatprep.subr.mxu0 0.0
        %877 = vmatpush2.msra.mxu0 0.0
        %878 = vmatprep.subr.mxu0 0.0
        %879 = vmatpush2.msra.mxu0 0.0
        %880 = vmatprep.subr.mxu0 0.0
        %881 = vmatpush2.msra.mxu0 0.0
        %882 = vmatprep.subr.mxu0 0.0
        %883 = vmatpush2.msra.mxu0 0.0
        %884 = vmatprep.subr.mxu0 0.0
        %885 = vmatpush2.msra.mxu0 0.0
        %886 = vmatprep.subr.mxu0 0.0
        %887 = vmatpush2.msra.mxu0 0.0
        %888 = vmatprep.subr.mxu0 0.0
        %889 = vmatpush2.msra.mxu0 0.0
        %890 = vmatprep.mubr.f32.mxu0 0.0
        %891 = vmatmul.mubr.f32.gmra.mxu0 %v824
        %v892 = vpop.f32.mrf.mxu0
        %v893 = vadd.f32 0.0, %v892
        %v894 = vpop.f32.mrf.mxu0
        %895 = vdwg.mxu0
        %896 = vrot.lane.b32.xlu0 %v326, 80
        %v897 = vpop.permute.xlu0 %896
        %898 = vrot.lane.b32.xlu0 %v328, 80
        %v899 = vpop.permute.xlu0 %898
        %v900 = vsel %vm400, %v897, 0
        %v902 = vsel %vm400, %v899, 0
        %904 = vmatprep.subr.mxu0 0.0
        %905 = vmatpush1.xpose.msra.mxu0 0.0
        %906 = vmatprep.subr.mxu0 0.0
        %907 = vmatpush1.xpose.msra.mxu0 0.0
        %908 = vmatprep.subr.mxu0 0.0
        %909 = vmatpush1.xpose.msra.mxu0 0.0
        %910 = vmatprep.subr.mxu0 0.0
        %911 = vmatpush1.xpose.msra.mxu0 0.0
        %912 = vmatprep.subr.mxu0 0.0
        %913 = vmatpush1.xpose.msra.mxu0 0.0
        %914 = vmatprep.subr.mxu0 0.0
        %915 = vmatpush1.xpose.msra.mxu0 0.0
        %916 = vmatprep.subr.mxu0 0.0
        %917 = vmatpush1.xpose.msra.mxu0 0.0
        %918 = vmatprep.subr.mxu0 0.0
        %919 = vmatpush1.xpose.msra.mxu0 0.0
        %920 = vmatprep.subr.mxu0 0.0
        %921 = vmatpush1.xpose.msra.mxu0 0.0
        %922 = vmatprep.subr.mxu0 0.0
        %923 = vmatpush1.xpose.msra.mxu0 0.0
        %924 = vmatprep.subr.mxu0 0.0
        %925 = vmatpush1.xpose.msra.mxu0 0.0
        %926 = vmatprep.subr.mxu0 0.0
        %927 = vmatpush1.xpose.msra.mxu0 0.0
        %928 = vmatprep.subr.mxu0 0.0
        %929 = vmatpush1.xpose.msra.mxu0 0.0
        %930 = vmatprep.subr.mxu0 0.0
        %931 = vmatpush1.xpose.msra.mxu0 0.0
        %932 = vmatprep.subr.mxu0 0.0
        %933 = vmatpush1.xpose.msra.mxu0 0.0
        %934 = vmatprep.subr.mxu0 0.0
        %935 = vmatpush1.xpose.msra.mxu0 %v902
        %936 = vmatprep.subr.mxu0 0.0
        %937 = vmatpush2.xpose.msra.mxu0 0.0
        %938 = vmatprep.subr.mxu0 0.0
        %939 = vmatpush2.xpose.msra.mxu0 0.0
        %940 = vmatprep.subr.mxu0 0.0
        %941 = vmatpush2.xpose.msra.mxu0 0.0
        %942 = vmatprep.subr.mxu0 0.0
        %943 = vmatpush2.xpose.msra.mxu0 0.0
        %944 = vmatprep.subr.mxu0 0.0
        %945 = vmatpush2.xpose.msra.mxu0 0.0
        %946 = vmatprep.subr.mxu0 0.0
        %947 = vmatpush2.xpose.msra.mxu0 0.0
        %948 = vmatprep.subr.mxu0 0.0
        %949 = vmatpush2.xpose.msra.mxu0 0.0
        %950 = vmatprep.subr.mxu0 0.0
        %951 = vmatpush2.xpose.msra.mxu0 0.0
        %952 = vmatprep.subr.mxu0 0.0
        %953 = vmatpush2.xpose.msra.mxu0 0.0
        %954 = vmatprep.subr.mxu0 0.0
        %955 = vmatpush2.xpose.msra.mxu0 0.0
        %956 = vmatprep.subr.mxu0 0.0
        %957 = vmatpush2.xpose.msra.mxu0 0.0
        %958 = vmatprep.subr.mxu0 0.0
        %959 = vmatpush2.xpose.msra.mxu0 0.0
        %960 = vmatprep.subr.mxu0 0.0
        %961 = vmatpush2.xpose.msra.mxu0 0.0
        %962 = vmatprep.subr.mxu0 0.0
        %963 = vmatpush2.xpose.msra.mxu0 0.0
        %964 = vmatprep.subr.mxu0 0.0
        %965 = vmatpush2.xpose.msra.mxu0 0.0
        %966 = vmatprep.subr.mxu0 0.0
        %967 = vmatpush2.xpose.msra.mxu0 0.0
        %968 = vmatprep.mubr.f32.mxu0 0.0
        %969 = vmatmul.mubr.f32.gmra.mxu0 %v900
        %v970 = vpop.f32.mrf.mxu0
        %v971 = vadd.f32 0.0, %v970
        %v972 = vpop.f32.mrf.mxu0
        %973 = vdwg.mxu0
        %v974 = vmul.f32 %v971, 0.35355338
        %v975 = vsel %vm478, %v974, -inf
        %976 = vmax.xlane.f32.xlu0 %v975
        %v977 = vpop.xlane.xlu0 %976
        %v978 = vsub.f32 %v974, %v977
        %v979 = vmul.f32 %v978, 1.442695
        %v980 = vpow.pop %v979
        %v981 = vsel %vm478, %v980, 0.0
        %982 = vadd.xlane.f32.xlu0 %v981
        %v983 = vpop.xlane.xlu0 %982
        %v984 = vrcp.pop %v983
        %v985 = vmul.f32 %v980, %v984
        %986 = vrot.lane.b32.xlu0 %v397, 80
        %v987 = vpop.permute.xlu0 %986
        %v990 = vsel %vm478, %v985, 0
        %992 = vmatprep.subr.mxu0 0.0
        %993 = vmatpush1.msra.mxu0 0.0
        %994 = vmatprep.subr.mxu0 0.0
        %995 = vmatpush1.msra.mxu0 0.0
        %996 = vmatprep.subr.mxu0 0.0
        %997 = vmatpush1.msra.mxu0 0.0
        %998 = vmatprep.subr.mxu0 0.0
        %999 = vmatpush1.msra.mxu0 0.0
        %1000 = vmatprep.subr.mxu0 0.0
        %1001 = vmatpush1.msra.mxu0 0.0
        %1002 = vmatprep.subr.mxu0 0.0
        %1003 = vmatpush1.msra.mxu0 0.0
        %1004 = vmatprep.subr.mxu0 0.0
        %1005 = vmatpush1.msra.mxu0 0.0
        %1006 = vmatprep.subr.mxu0 0.0
        %1007 = vmatpush1.msra.mxu0 0.0
        %1008 = vmatprep.subr.mxu0 0.0
        %1009 = vmatpush1.msra.mxu0 0.0
        %1010 = vmatprep.subr.mxu0 0.0
        %1011 = vmatpush1.msra.mxu0 0.0
        %1012 = vmatprep.subr.mxu0 0.0
        %1013 = vmatpush1.msra.mxu0 0.0
        %1014 = vmatprep.subr.mxu0 0.0
        %1015 = vmatpush1.msra.mxu0 0.0
        %1016 = vmatprep.subr.mxu0 0.0
        %1017 = vmatpush1.msra.mxu0 0.0
        %1018 = vmatprep.subr.mxu0 0.0
        %1019 = vmatpush1.msra.mxu0 0.0
        %1020 = vmatprep.subr.mxu0 0.0
        %1021 = vmatpush1.msra.mxu0 0.0
        %1022 = vmatprep.subr.mxu0 0.0
        %1023 = vmatpush1.msra.mxu0 %v987
        %1024 = vmatprep.subr.mxu0 0.0
        %1025 = vmatpush2.msra.mxu0 0.0
        %1026 = vmatprep.subr.mxu0 0.0
        %1027 = vmatpush2.msra.mxu0 0.0
        %1028 = vmatprep.subr.mxu0 0.0
        %1029 = vmatpush2.msra.mxu0 0.0
        %1030 = vmatprep.subr.mxu0 0.0
        %1031 = vmatpush2.msra.mxu0 0.0
        %1032 = vmatprep.subr.mxu0 0.0
        %1033 = vmatpush2.msra.mxu0 0.0
        %1034 = vmatprep.subr.mxu0 0.0
        %1035 = vmatpush2.msra.mxu0 0.0
        %1036 = vmatprep.subr.mxu0 0.0
        %1037 = vmatpush2.msra.mxu0 0.0
        %1038 = vmatprep.subr.mxu0 0.0
        %1039 = vmatpush2.msra.mxu0 0.0
        %1040 = vmatprep.subr.mxu0 0.0
        %1041 = vmatpush2.msra.mxu0 0.0
        %1042 = vmatprep.subr.mxu0 0.0
        %1043 = vmatpush2.msra.mxu0 0.0
        %1044 = vmatprep.subr.mxu0 0.0
        %1045 = vmatpush2.msra.mxu0 0.0
        %1046 = vmatprep.subr.mxu0 0.0
        %1047 = vmatpush2.msra.mxu0 0.0
        %1048 = vmatprep.subr.mxu0 0.0
        %1049 = vmatpush2.msra.mxu0 0.0
        %1050 = vmatprep.subr.mxu0 0.0
        %1051 = vmatpush2.msra.mxu0 0.0
        %1052 = vmatprep.subr.mxu0 0.0
        %1053 = vmatpush2.msra.mxu0 0.0
        %1054 = vmatprep.subr.mxu0 0.0
        %1055 = vmatpush2.msra.mxu0 0.0
        %1056 = vmatprep.mubr.f32.mxu0 0.0
        %1057 = vmatmul.mubr.f32.gmra.mxu0 %v990
        %v1058 = vpop.f32.mrf.mxu0
        %v1059 = vadd.f32 0.0, %v1058
        %v1060 = vpop.f32.mrf.mxu0
        %1061 = vdwg.mxu0
        %1062 = vrot.lane.b32.xlu0 %v326, 64
        %v1063 = vpop.permute.xlu0 %1062
        %1064 = vrot.lane.b32.xlu0 %v328, 64
        %v1065 = vpop.permute.xlu0 %1064
        %v1066 = vsel %vm400, %v1063, 0
        %v1068 = vsel %vm400, %v1065, 0
        %1070 = vmatprep.subr.mxu0 0.0
        %1071 = vmatpush1.xpose.msra.mxu0 0.0
        %1072 = vmatprep.subr.mxu0 0.0
        %1073 = vmatpush1.xpose.msra.mxu0 0.0
        %1074 = vmatprep.subr.mxu0 0.0
        %1075 = vmatpush1.xpose.msra.mxu0 0.0
        %1076 = vmatprep.subr.mxu0 0.0
        %1077 = vmatpush1.xpose.msra.mxu0 0.0
        %1078 = vmatprep.subr.mxu0 0.0
        %1079 = vmatpush1.xpose.msra.mxu0 0.0
        %1080 = vmatprep.subr.mxu0 0.0
        %1081 = vmatpush1.xpose.msra.mxu0 0.0
        %1082 = vmatprep.subr.mxu0 0.0
        %1083 = vmatpush1.xpose.msra.mxu0 0.0
        %1084 = vmatprep.subr.mxu0 0.0
        %1085 = vmatpush1.xpose.msra.mxu0 0.0
        %1086 = vmatprep.subr.mxu0 0.0
        %1087 = vmatpush1.xpose.msra.mxu0 0.0
        %1088 = vmatprep.subr.mxu0 0.0
        %1089 = vmatpush1.xpose.msra.mxu0 0.0
        %1090 = vmatprep.subr.mxu0 0.0
        %1091 = vmatpush1.xpose.msra.mxu0 0.0
        %1092 = vmatprep.subr.mxu0 0.0
        %1093 = vmatpush1.xpose.msra.mxu0 0.0
        %1094 = vmatprep.subr.mxu0 0.0
        %1095 = vmatpush1.xpose.msra.mxu0 0.0
        %1096 = vmatprep.subr.mxu0 0.0
        %1097 = vmatpush1.xpose.msra.mxu0 0.0
        %1098 = vmatprep.subr.mxu0 0.0
        %1099 = vmatpush1.xpose.msra.mxu0 0.0
        %1100 = vmatprep.subr.mxu0 0.0
        %1101 = vmatpush1.xpose.msra.mxu0 %v1068
        %1102 = vmatprep.subr.mxu0 0.0
        %1103 = vmatpush2.xpose.msra.mxu0 0.0
        %1104 = vmatprep.subr.mxu0 0.0
        %1105 = vmatpush2.xpose.msra.mxu0 0.0
        %1106 = vmatprep.subr.mxu0 0.0
        %1107 = vmatpush2.xpose.msra.mxu0 0.0
        %1108 = vmatprep.subr.mxu0 0.0
        %1109 = vmatpush2.xpose.msra.mxu0 0.0
        %1110 = vmatprep.subr.mxu0 0.0
        %1111 = vmatpush2.xpose.msra.mxu0 0.0
        %1112 = vmatprep.subr.mxu0 0.0
        %1113 = vmatpush2.xpose.msra.mxu0 0.0
        %1114 = vmatprep.subr.mxu0 0.0
        %1115 = vmatpush2.xpose.msra.mxu0 0.0
        %1116 = vmatprep.subr.mxu0 0.0
        %1117 = vmatpush2.xpose.msra.mxu0 0.0
        %1118 = vmatprep.subr.mxu0 0.0
        %1119 = vmatpush2.xpose.msra.mxu0 0.0
        %1120 = vmatprep.subr.mxu0 0.0
        %1121 = vmatpush2.xpose.msra.mxu0 0.0
        %1122 = vmatprep.subr.mxu0 0.0
        %1123 = vmatpush2.xpose.msra.mxu0 0.0
        %1124 = vmatprep.subr.mxu0 0.0
        %1125 = vmatpush2.xpose.msra.mxu0 0.0
        %1126 = vmatprep.subr.mxu0 0.0
        %1127 = vmatpush2.xpose.msra.mxu0 0.0
        %1128 = vmatprep.subr.mxu0 0.0
        %1129 = vmatpush2.xpose.msra.mxu0 0.0
        %1130 = vmatprep.subr.mxu0 0.0
        %1131 = vmatpush2.xpose.msra.mxu0 0.0
        %1132 = vmatprep.subr.mxu0 0.0
        %1133 = vmatpush2.xpose.msra.mxu0 0.0
        %1134 = vmatprep.mubr.f32.mxu0 0.0
        %1135 = vmatmul.mubr.f32.gmra.mxu0 %v1066
        %v1136 = vpop.f32.mrf.mxu0
        %v1137 = vadd.f32 0.0, %v1136
        %v1138 = vpop.f32.mrf.mxu0
        %1139 = vdwg.mxu0
        %v1140 = vmul.f32 %v1137, 0.35355338
        %v1141 = vsel %vm478, %v1140, -inf
        %1142 = vmax.xlane.f32.xlu0 %v1141
        %v1143 = vpop.xlane.xlu0 %1142
        %v1144 = vsub.f32 %v1140, %v1143
        %v1145 = vmul.f32 %v1144, 1.442695
        %v1146 = vpow.pop %v1145
        %v1147 = vsel %vm478, %v1146, 0.0
        %1148 = vadd.xlane.f32.xlu0 %v1147
        %v1149 = vpop.xlane.xlu0 %1148
        %v1150 = vrcp.pop %v1149
        %v1151 = vmul.f32 %v1146, %v1150
        %1152 = vrot.lane.b32.xlu0 %v397, 64
        %v1153 = vpop.permute.xlu0 %1152
        %v1156 = vsel %vm478, %v1151, 0
        %1158 = vmatprep.subr.mxu0 0.0
        %1159 = vmatpush1.msra.mxu0 0.0
        %1160 = vmatprep.subr.mxu0 0.0
        %1161 = vmatpush1.msra.mxu0 0.0
        %1162 = vmatprep.subr.mxu0 0.0
        %1163 = vmatpush1.msra.mxu0 0.0
        %1164 = vmatprep.subr.mxu0 0.0
        %1165 = vmatpush1.msra.mxu0 0.0
        %1166 = vmatprep.subr.mxu0 0.0
        %1167 = vmatpush1.msra.mxu0 0.0
        %1168 = vmatprep.subr.mxu0 0.0
        %1169 = vmatpush1.msra.mxu0 0.0
        %1170 = vmatprep.subr.mxu0 0.0
        %1171 = vmatpush1.msra.mxu0 0.0
        %1172 = vmatprep.subr.mxu0 0.0
        %1173 = vmatpush1.msra.mxu0 0.0
        %1174 = vmatprep.subr.mxu0 0.0
        %1175 = vmatpush1.msra.mxu0 0.0
        %1176 = vmatprep.subr.mxu0 0.0
        %1177 = vmatpush1.msra.mxu0 0.0
        %1178 = vmatprep.subr.mxu0 0.0
        %1179 = vmatpush1.msra.mxu0 0.0
        %1180 = vmatprep.subr.mxu0 0.0
        %1181 = vmatpush1.msra.mxu0 0.0
        %1182 = vmatprep.subr.mxu0 0.0
        %1183 = vmatpush1.msra.mxu0 0.0
        %1184 = vmatprep.subr.mxu0 0.0
        %1185 = vmatpush1.msra.mxu0 0.0
        %1186 = vmatprep.subr.mxu0 0.0
        %1187 = vmatpush1.msra.mxu0 0.0
        %1188 = vmatprep.subr.mxu0 0.0
        %1189 = vmatpush1.msra.mxu0 %v1153
        %1190 = vmatprep.subr.mxu0 0.0
        %1191 = vmatpush2.msra.mxu0 0.0
        %1192 = vmatprep.subr.mxu0 0.0
        %1193 = vmatpush2.msra.mxu0 0.0
        %1194 = vmatprep.subr.mxu0 0.0
        %1195 = vmatpush2.msra.mxu0 0.0
        %1196 = vmatprep.subr.mxu0 0.0
        %1197 = vmatpush2.msra.mxu0 0.0
        %1198 = vmatprep.subr.mxu0 0.0
        %1199 = vmatpush2.msra.mxu0 0.0
        %1200 = vmatprep.subr.mxu0 0.0
        %1201 = vmatpush2.msra.mxu0 0.0
        %1202 = vmatprep.subr.mxu0 0.0
        %1203 = vmatpush2.msra.mxu0 0.0
        %1204 = vmatprep.subr.mxu0 0.0
        %1205 = vmatpush2.msra.mxu0 0.0
        %1206 = vmatprep.subr.mxu0 0.0
        %1207 = vmatpush2.msra.mxu0 0.0
        %1208 = vmatprep.subr.mxu0 0.0
        %1209 = vmatpush2.msra.mxu0 0.0
        %1210 = vmatprep.subr.mxu0 0.0
        %1211 = vmatpush2.msra.mxu0 0.0
        %1212 = vmatprep.subr.mxu0 0.0
        %1213 = vmatpush2.msra.mxu0 0.0
        %1214 = vmatprep.subr.mxu0 0.0
        %1215 = vmatpush2.msra.mxu0 0.0
        %1216 = vmatprep.subr.mxu0 0.0
        %1217 = vmatpush2.msra.mxu0 0.0
        %1218 = vmatprep.subr.mxu0 0.0
        %1219 = vmatpush2.msra.mxu0 0.0
        %1220 = vmatprep.subr.mxu0 0.0
        %1221 = vmatpush2.msra.mxu0 0.0
        %1222 = vmatprep.mubr.f32.mxu0 0.0
        %1223 = vmatmul.mubr.f32.gmra.mxu0 %v1156
        %v1224 = vpop.f32.mrf.mxu0
        %v1225 = vadd.f32 0.0, %v1224
        %v1226 = vpop.f32.mrf.mxu0
        %1227 = vdwg.mxu0
        %1228 = vrot.lane.b32.xlu0 %v326, 48
        %v1229 = vpop.permute.xlu0 %1228
        %1230 = vrot.lane.b32.xlu0 %v328, 48
        %v1231 = vpop.permute.xlu0 %1230
        %v1232 = vsel %vm400, %v1229, 0
        %v1234 = vsel %vm400, %v1231, 0
        %1236 = vmatprep.subr.mxu0 0.0
        %1237 = vmatpush1.xpose.msra.mxu0 0.0
        %1238 = vmatprep.subr.mxu0 0.0
        %1239 = vmatpush1.xpose.msra.mxu0 0.0
        %1240 = vmatprep.subr.mxu0 0.0
        %1241 = vmatpush1.xpose.msra.mxu0 0.0
        %1242 = vmatprep.subr.mxu0 0.0
        %1243 = vmatpush1.xpose.msra.mxu0 0.0
        %1244 = vmatprep.subr.mxu0 0.0
        %1245 = vmatpush1.xpose.msra.mxu0 0.0
        %1246 = vmatprep.subr.mxu0 0.0
        %1247 = vmatpush1.xpose.msra.mxu0 0.0
        %1248 = vmatprep.subr.mxu0 0.0
        %1249 = vmatpush1.xpose.msra.mxu0 0.0
        %1250 = vmatprep.subr.mxu0 0.0
        %1251 = vmatpush1.xpose.msra.mxu0 0.0
        %1252 = vmatprep.subr.mxu0 0.0
        %1253 = vmatpush1.xpose.msra.mxu0 0.0
        %1254 = vmatprep.subr.mxu0 0.0
        %1255 = vmatpush1.xpose.msra.mxu0 0.0
        %1256 = vmatprep.subr.mxu0 0.0
        %1257 = vmatpush1.xpose.msra.mxu0 0.0
        %1258 = vmatprep.subr.mxu0 0.0
        %1259 = vmatpush1.xpose.msra.mxu0 0.0
        %1260 = vmatprep.subr.mxu0 0.0
        %1261 = vmatpush1.xpose.msra.mxu0 0.0
        %1262 = vmatprep.subr.mxu0 0.0
        %1263 = vmatpush1.xpose.msra.mxu0 0.0
        %1264 = vmatprep.subr.mxu0 0.0
        %1265 = vmatpush1.xpose.msra.mxu0 0.0
        %1266 = vmatprep.subr.mxu0 0.0
        %1267 = vmatpush1.xpose.msra.mxu0 %v1234
        %1268 = vmatprep.subr.mxu0 0.0
        %1269 = vmatpush2.xpose.msra.mxu0 0.0
        %1270 = vmatprep.subr.mxu0 0.0
        %1271 = vmatpush2.xpose.msra.mxu0 0.0
        %1272 = vmatprep.subr.mxu0 0.0
        %1273 = vmatpush2.xpose.msra.mxu0 0.0
        %1274 = vmatprep.subr.mxu0 0.0
        %1275 = vmatpush2.xpose.msra.mxu0 0.0
        %1276 = vmatprep.subr.mxu0 0.0
        %1277 = vmatpush2.xpose.msra.mxu0 0.0
        %1278 = vmatprep.subr.mxu0 0.0
        %1279 = vmatpush2.xpose.msra.mxu0 0.0
        %1280 = vmatprep.subr.mxu0 0.0
        %1281 = vmatpush2.xpose.msra.mxu0 0.0
        %1282 = vmatprep.subr.mxu0 0.0
        %1283 = vmatpush2.xpose.msra.mxu0 0.0
        %1284 = vmatprep.subr.mxu0 0.0
        %1285 = vmatpush2.xpose.msra.mxu0 0.0
        %1286 = vmatprep.subr.mxu0 0.0
        %1287 = vmatpush2.xpose.msra.mxu0 0.0
        %1288 = vmatprep.subr.mxu0 0.0
        %1289 = vmatpush2.xpose.msra.mxu0 0.0
        %1290 = vmatprep.subr.mxu0 0.0
        %1291 = vmatpush2.xpose.msra.mxu0 0.0
        %1292 = vmatprep.subr.mxu0 0.0
        %1293 = vmatpush2.xpose.msra.mxu0 0.0
        %1294 = vmatprep.subr.mxu0 0.0
        %1295 = vmatpush2.xpose.msra.mxu0 0.0
        %1296 = vmatprep.subr.mxu0 0.0
        %1297 = vmatpush2.xpose.msra.mxu0 0.0
        %1298 = vmatprep.subr.mxu0 0.0
        %1299 = vmatpush2.xpose.msra.mxu0 0.0
        %1300 = vmatprep.mubr.f32.mxu0 0.0
        %1301 = vmatmul.mubr.f32.gmra.mxu0 %v1232
        %v1302 = vpop.f32.mrf.mxu0
        %v1303 = vadd.f32 0.0, %v1302
        %v1304 = vpop.f32.mrf.mxu0
        %1305 = vdwg.mxu0
        %v1306 = vmul.f32 %v1303, 0.35355338
        %v1307 = vsel %vm478, %v1306, -inf
        %1308 = vmax.xlane.f32.xlu0 %v1307
        %v1309 = vpop.xlane.xlu0 %1308
        %v1310 = vsub.f32 %v1306, %v1309
        %v1311 = vmul.f32 %v1310, 1.442695
        %v1312 = vpow.pop %v1311
        %v1313 = vsel %vm478, %v1312, 0.0
        %1314 = vadd.xlane.f32.xlu0 %v1313
        %v1315 = vpop.xlane.xlu0 %1314
        %v1316 = vrcp.pop %v1315
        %v1317 = vmul.f32 %v1312, %v1316
        %1318 = vrot.lane.b32.xlu0 %v397, 48
        %v1319 = vpop.permute.xlu0 %1318
        %v1322 = vsel %vm478, %v1317, 0
        %1324 = vmatprep.subr.mxu0 0.0
        %1325 = vmatpush1.msra.mxu0 0.0
        %1326 = vmatprep.subr.mxu0 0.0
        %1327 = vmatpush1.msra.mxu0 0.0
        %1328 = vmatprep.subr.mxu0 0.0
        %1329 = vmatpush1.msra.mxu0 0.0
        %1330 = vmatprep.subr.mxu0 0.0
        %1331 = vmatpush1.msra.mxu0 0.0
        %1332 = vmatprep.subr.mxu0 0.0
        %1333 = vmatpush1.msra.mxu0 0.0
        %1334 = vmatprep.subr.mxu0 0.0
        %1335 = vmatpush1.msra.mxu0 0.0
        %1336 = vmatprep.subr.mxu0 0.0
        %1337 = vmatpush1.msra.mxu0 0.0
        %1338 = vmatprep.subr.mxu0 0.0
        %1339 = vmatpush1.msra.mxu0 0.0
        %1340 = vmatprep.subr.mxu0 0.0
        %1341 = vmatpush1.msra.mxu0 0.0
        %1342 = vmatprep.subr.mxu0 0.0
        %1343 = vmatpush1.msra.mxu0 0.0
        %1344 = vmatprep.subr.mxu0 0.0
        %1345 = vmatpush1.msra.mxu0 0.0
        %1346 = vmatprep.subr.mxu0 0.0
        %1347 = vmatpush1.msra.mxu0 0.0
        %1348 = vmatprep.subr.mxu0 0.0
        %1349 = vmatpush1.msra.mxu0 0.0
        %1350 = vmatprep.subr.mxu0 0.0
        %1351 = vmatpush1.msra.mxu0 0.0
        %1352 = vmatprep.subr.mxu0 0.0
        %1353 = vmatpush1.msra.mxu0 0.0
        %1354 = vmatprep.subr.mxu0 0.0
        %1355 = vmatpush1.msra.mxu0 %v1319
        %1356 = vmatprep.subr.mxu0 0.0
        %1357 = vmatpush2.msra.mxu0 0.0
        %1358 = vmatprep.subr.mxu0 0.0
        %1359 = vmatpush2.msra.mxu0 0.0
        %1360 = vmatprep.subr.mxu0 0.0
        %1361 = vmatpush2.msra.mxu0 0.0
        %1362 = vmatprep.subr.mxu0 0.0
        %1363 = vmatpush2.msra.mxu0 0.0
        %1364 = vmatprep.subr.mxu0 0.0
        %1365 = vmatpush2.msra.mxu0 0.0
        %1366 = vmatprep.subr.mxu0 0.0
        %1367 = vmatpush2.msra.mxu0 0.0
        %1368 = vmatprep.subr.mxu0 0.0
        %1369 = vmatpush2.msra.mxu0 0.0
        %1370 = vmatprep.subr.mxu0 0.0
        %1371 = vmatpush2.msra.mxu0 0.0
        %1372 = vmatprep.subr.mxu0 0.0
        %1373 = vmatpush2.msra.mxu0 0.0
        %1374 = vmatprep.subr.mxu0 0.0
        %1375 = vmatpush2.msra.mxu0 0.0
        %1376 = vmatprep.subr.mxu0 0.0
        %1377 = vmatpush2.msra.mxu0 0.0
        %1378 = vmatprep.subr.mxu0 0.0
        %1379 = vmatpush2.msra.mxu0 0.0
        %1380 = vmatprep.subr.mxu0 0.0
        %1381 = vmatpush2.msra.mxu0 0.0
        %1382 = vmatprep.subr.mxu0 0.0
        %1383 = vmatpush2.msra.mxu0 0.0
        %1384 = vmatprep.subr.mxu0 0.0
        %1385 = vmatpush2.msra.mxu0 0.0
        %1386 = vmatprep.subr.mxu0 0.0
        %1387 = vmatpush2.msra.mxu0 0.0
        %1388 = vmatprep.mubr.f32.mxu0 0.0
        %1389 = vmatmul.mubr.f32.gmra.mxu0 %v1322
        %v1390 = vpop.f32.mrf.mxu0
        %v1391 = vadd.f32 0.0, %v1390
        %v1392 = vpop.f32.mrf.mxu0
        %1393 = vdwg.mxu0
        %1394 = vrot.lane.b32.xlu0 %v326, 32
        %v1395 = vpop.permute.xlu0 %1394
        %1396 = vrot.lane.b32.xlu0 %v328, 32
        %v1397 = vpop.permute.xlu0 %1396
        %v1398 = vsel %vm400, %v1395, 0
        %v1400 = vsel %vm400, %v1397, 0
        %1402 = vmatprep.subr.mxu0 0.0
        %1403 = vmatpush1.xpose.msra.mxu0 0.0
        %1404 = vmatprep.subr.mxu0 0.0
        %1405 = vmatpush1.xpose.msra.mxu0 0.0
        %1406 = vmatprep.subr.mxu0 0.0
        %1407 = vmatpush1.xpose.msra.mxu0 0.0
        %1408 = vmatprep.subr.mxu0 0.0
        %1409 = vmatpush1.xpose.msra.mxu0 0.0
        %1410 = vmatprep.subr.mxu0 0.0
        %1411 = vmatpush1.xpose.msra.mxu0 0.0
        %1412 = vmatprep.subr.mxu0 0.0
        %1413 = vmatpush1.xpose.msra.mxu0 0.0
        %1414 = vmatprep.subr.mxu0 0.0
        %1415 = vmatpush1.xpose.msra.mxu0 0.0
        %1416 = vmatprep.subr.mxu0 0.0
        %1417 = vmatpush1.xpose.msra.mxu0 0.0
        %1418 = vmatprep.subr.mxu0 0.0
        %1419 = vmatpush1.xpose.msra.mxu0 0.0
        %1420 = vmatprep.subr.mxu0 0.0
        %1421 = vmatpush1.xpose.msra.mxu0 0.0
        %1422 = vmatprep.subr.mxu0 0.0
        %1423 = vmatpush1.xpose.msra.mxu0 0.0
        %1424 = vmatprep.subr.mxu0 0.0
        %1425 = vmatpush1.xpose.msra.mxu0 0.0
        %1426 = vmatprep.subr.mxu0 0.0
        %1427 = vmatpush1.xpose.msra.mxu0 0.0
        %1428 = vmatprep.subr.mxu0 0.0
        %1429 = vmatpush1.xpose.msra.mxu0 0.0
        %1430 = vmatprep.subr.mxu0 0.0
        %1431 = vmatpush1.xpose.msra.mxu0 0.0
        %1432 = vmatprep.subr.mxu0 0.0
        %1433 = vmatpush1.xpose.msra.mxu0 %v1400
        %1434 = vmatprep.subr.mxu0 0.0
        %1435 = vmatpush2.xpose.msra.mxu0 0.0
        %1436 = vmatprep.subr.mxu0 0.0
        %1437 = vmatpush2.xpose.msra.mxu0 0.0
        %1438 = vmatprep.subr.mxu0 0.0
        %1439 = vmatpush2.xpose.msra.mxu0 0.0
        %1440 = vmatprep.subr.mxu0 0.0
        %1441 = vmatpush2.xpose.msra.mxu0 0.0
        %1442 = vmatprep.subr.mxu0 0.0
        %1443 = vmatpush2.xpose.msra.mxu0 0.0
        %1444 = vmatprep.subr.mxu0 0.0
        %1445 = vmatpush2.xpose.msra.mxu0 0.0
        %1446 = vmatprep.subr.mxu0 0.0
        %1447 = vmatpush2.xpose.msra.mxu0 0.0
        %1448 = vmatprep.subr.mxu0 0.0
        %1449 = vmatpush2.xpose.msra.mxu0 0.0
        %1450 = vmatprep.subr.mxu0 0.0
        %1451 = vmatpush2.xpose.msra.mxu0 0.0
        %1452 = vmatprep.subr.mxu0 0.0
        %1453 = vmatpush2.xpose.msra.mxu0 0.0
        %1454 = vmatprep.subr.mxu0 0.0
        %1455 = vmatpush2.xpose.msra.mxu0 0.0
        %1456 = vmatprep.subr.mxu0 0.0
        %1457 = vmatpush2.xpose.msra.mxu0 0.0
        %1458 = vmatprep.subr.mxu0 0.0
        %1459 = vmatpush2.xpose.msra.mxu0 0.0
        %1460 = vmatprep.subr.mxu0 0.0
        %1461 = vmatpush2.xpose.msra.mxu0 0.0
        %1462 = vmatprep.subr.mxu0 0.0
        %1463 = vmatpush2.xpose.msra.mxu0 0.0
        %1464 = vmatprep.subr.mxu0 0.0
        %1465 = vmatpush2.xpose.msra.mxu0 0.0
        %1466 = vmatprep.mubr.f32.mxu0 0.0
        %1467 = vmatmul.mubr.f32.gmra.mxu0 %v1398
        %v1468 = vpop.f32.mrf.mxu0
        %v1469 = vadd.f32 0.0, %v1468
        %v1470 = vpop.f32.mrf.mxu0
        %1471 = vdwg.mxu0
        %v1472 = vmul.f32 %v1469, 0.35355338
        %v1473 = vsel %vm478, %v1472, -inf
        %1474 = vmax.xlane.f32.xlu0 %v1473
        %v1475 = vpop.xlane.xlu0 %1474
        %v1476 = vsub.f32 %v1472, %v1475
        %v1477 = vmul.f32 %v1476, 1.442695
        %v1478 = vpow.pop %v1477
        %v1479 = vsel %vm478, %v1478, 0.0
        %1480 = vadd.xlane.f32.xlu0 %v1479
        %v1481 = vpop.xlane.xlu0 %1480
        %v1482 = vrcp.pop %v1481
        %v1483 = vmul.f32 %v1478, %v1482
        %1484 = vrot.lane.b32.xlu0 %v397, 32
        %v1485 = vpop.permute.xlu0 %1484
        %v1488 = vsel %vm478, %v1483, 0
        %1490 = vmatprep.subr.mxu0 0.0
        %1491 = vmatpush1.msra.mxu0 0.0
        %1492 = vmatprep.subr.mxu0 0.0
        %1493 = vmatpush1.msra.mxu0 0.0
        %1494 = vmatprep.subr.mxu0 0.0
        %1495 = vmatpush1.msra.mxu0 0.0
        %1496 = vmatprep.subr.mxu0 0.0
        %1497 = vmatpush1.msra.mxu0 0.0
        %1498 = vmatprep.subr.mxu0 0.0
        %1499 = vmatpush1.msra.mxu0 0.0
        %1500 = vmatprep.subr.mxu0 0.0
        %1501 = vmatpush1.msra.mxu0 0.0
        %1502 = vmatprep.subr.mxu0 0.0
        %1503 = vmatpush1.msra.mxu0 0.0
        %1504 = vmatprep.subr.mxu0 0.0
        %1505 = vmatpush1.msra.mxu0 0.0
        %1506 = vmatprep.subr.mxu0 0.0
        %1507 = vmatpush1.msra.mxu0 0.0
        %1508 = vmatprep.subr.mxu0 0.0
        %1509 = vmatpush1.msra.mxu0 0.0
        %1510 = vmatprep.subr.mxu0 0.0
        %1511 = vmatpush1.msra.mxu0 0.0
        %1512 = vmatprep.subr.mxu0 0.0
        %1513 = vmatpush1.msra.mxu0 0.0
        %1514 = vmatprep.subr.mxu0 0.0
        %1515 = vmatpush1.msra.mxu0 0.0
        %1516 = vmatprep.subr.mxu0 0.0
        %1517 = vmatpush1.msra.mxu0 0.0
        %1518 = vmatprep.subr.mxu0 0.0
        %1519 = vmatpush1.msra.mxu0 0.0
        %1520 = vmatprep.subr.mxu0 0.0
        %1521 = vmatpush1.msra.mxu0 %v1485
        %1522 = vmatprep.subr.mxu0 0.0
        %1523 = vmatpush2.msra.mxu0 0.0
        %1524 = vmatprep.subr.mxu0 0.0
        %1525 = vmatpush2.msra.mxu0 0.0
        %1526 = vmatprep.subr.mxu0 0.0
        %1527 = vmatpush2.msra.mxu0 0.0
        %1528 = vmatprep.subr.mxu0 0.0
        %1529 = vmatpush2.msra.mxu0 0.0
        %1530 = vmatprep.subr.mxu0 0.0
        %1531 = vmatpush2.msra.mxu0 0.0
        %1532 = vmatprep.subr.mxu0 0.0
        %1533 = vmatpush2.msra.mxu0 0.0
        %1534 = vmatprep.subr.mxu0 0.0
        %1535 = vmatpush2.msra.mxu0 0.0
        %1536 = vmatprep.subr.mxu0 0.0
        %1537 = vmatpush2.msra.mxu0 0.0
        %1538 = vmatprep.subr.mxu0 0.0
        %1539 = vmatpush2.msra.mxu0 0.0
        %1540 = vmatprep.subr.mxu0 0.0
        %1541 = vmatpush2.msra.mxu0 0.0
        %1542 = vmatprep.subr.mxu0 0.0
        %1543 = vmatpush2.msra.mxu0 0.0
        %1544 = vmatprep.subr.mxu0 0.0
        %1545 = vmatpush2.msra.mxu0 0.0
        %1546 = vmatprep.subr.mxu0 0.0
        %1547 = vmatpush2.msra.mxu0 0.0
        %1548 = vmatprep.subr.mxu0 0.0
        %1549 = vmatpush2.msra.mxu0 0.0
        %1550 = vmatprep.subr.mxu0 0.0
        %1551 = vmatpush2.msra.mxu0 0.0
        %1552 = vmatprep.subr.mxu0 0.0
        %1553 = vmatpush2.msra.mxu0 0.0
        %1554 = vmatprep.mubr.f32.mxu0 0.0
        %1555 = vmatmul.mubr.f32.gmra.mxu0 %v1488
        %v1556 = vpop.f32.mrf.mxu0
        %v1557 = vadd.f32 0.0, %v1556
        %v1558 = vpop.f32.mrf.mxu0
        %1559 = vdwg.mxu0
        %1560 = vrot.lane.b32.xlu0 %v326, 16
        %v1561 = vpop.permute.xlu0 %1560
        %1562 = vrot.lane.b32.xlu0 %v328, 16
        %v1563 = vpop.permute.xlu0 %1562
        %v1564 = vsel %vm400, %v1561, 0
        %v1566 = vsel %vm400, %v1563, 0
        %1568 = vmatprep.subr.mxu0 0.0
        %1569 = vmatpush1.xpose.msra.mxu0 0.0
        %1570 = vmatprep.subr.mxu0 0.0
        %1571 = vmatpush1.xpose.msra.mxu0 0.0
        %1572 = vmatprep.subr.mxu0 0.0
        %1573 = vmatpush1.xpose.msra.mxu0 0.0
        %1574 = vmatprep.subr.mxu0 0.0
        %1575 = vmatpush1.xpose.msra.mxu0 0.0
        %1576 = vmatprep.subr.mxu0 0.0
        %1577 = vmatpush1.xpose.msra.mxu0 0.0
        %1578 = vmatprep.subr.mxu0 0.0
        %1579 = vmatpush1.xpose.msra.mxu0 0.0
        %1580 = vmatprep.subr.mxu0 0.0
        %1581 = vmatpush1.xpose.msra.mxu0 0.0
        %1582 = vmatprep.subr.mxu0 0.0
        %1583 = vmatpush1.xpose.msra.mxu0 0.0
        %1584 = vmatprep.subr.mxu0 0.0
        %1585 = vmatpush1.xpose.msra.mxu0 0.0
        %1586 = vmatprep.subr.mxu0 0.0
        %1587 = vmatpush1.xpose.msra.mxu0 0.0
        %1588 = vmatprep.subr.mxu0 0.0
        %1589 = vmatpush1.xpose.msra.mxu0 0.0
        %1590 = vmatprep.subr.mxu0 0.0
        %1591 = vmatpush1.xpose.msra.mxu0 0.0
        %1592 = vmatprep.subr.mxu0 0.0
        %1593 = vmatpush1.xpose.msra.mxu0 0.0
        %1594 = vmatprep.subr.mxu0 0.0
        %1595 = vmatpush1.xpose.msra.mxu0 0.0
        %1596 = vmatprep.subr.mxu0 0.0
        %1597 = vmatpush1.xpose.msra.mxu0 0.0
        %1598 = vmatprep.subr.mxu0 0.0
        %1599 = vmatpush1.xpose.msra.mxu0 %v1566
        %1600 = vmatprep.subr.mxu0 0.0
        %1601 = vmatpush2.xpose.msra.mxu0 0.0
        %1602 = vmatprep.subr.mxu0 0.0
        %1603 = vmatpush2.xpose.msra.mxu0 0.0
        %1604 = vmatprep.subr.mxu0 0.0
        %1605 = vmatpush2.xpose.msra.mxu0 0.0
        %1606 = vmatprep.subr.mxu0 0.0
        %1607 = vmatpush2.xpose.msra.mxu0 0.0
        %1608 = vmatprep.subr.mxu0 0.0
        %1609 = vmatpush2.xpose.msra.mxu0 0.0
        %1610 = vmatprep.subr.mxu0 0.0
        %1611 = vmatpush2.xpose.msra.mxu0 0.0
        %1612 = vmatprep.subr.mxu0 0.0
        %1613 = vmatpush2.xpose.msra.mxu0 0.0
        %1614 = vmatprep.subr.mxu0 0.0
        %1615 = vmatpush2.xpose.msra.mxu0 0.0
        %1616 = vmatprep.subr.mxu0 0.0
        %1617 = vmatpush2.xpose.msra.mxu0 0.0
        %1618 = vmatprep.subr.mxu0 0.0
        %1619 = vmatpush2.xpose.msra.mxu0 0.0
        %1620 = vmatprep.subr.mxu0 0.0
        %1621 = vmatpush2.xpose.msra.mxu0 0.0
        %1622 = vmatprep.subr.mxu0 0.0
        %1623 = vmatpush2.xpose.msra.mxu0 0.0
        %1624 = vmatprep.subr.mxu0 0.0
        %1625 = vmatpush2.xpose.msra.mxu0 0.0
        %1626 = vmatprep.subr.mxu0 0.0
        %1627 = vmatpush2.xpose.msra.mxu0 0.0
        %1628 = vmatprep.subr.mxu0 0.0
        %1629 = vmatpush2.xpose.msra.mxu0 0.0
        %1630 = vmatprep.subr.mxu0 0.0
        %1631 = vmatpush2.xpose.msra.mxu0 0.0
        %1632 = vmatprep.mubr.f32.mxu0 0.0
        %1633 = vmatmul.mubr.f32.gmra.mxu0 %v1564
        %v1634 = vpop.f32.mrf.mxu0
        %v1635 = vadd.f32 0.0, %v1634
        %v1636 = vpop.f32.mrf.mxu0
        %1637 = vdwg.mxu0
        %v1638 = vmul.f32 %v1635, 0.35355338
        %v1639 = vsel %vm478, %v1638, -inf
        %1640 = vmax.xlane.f32.xlu0 %v1639
        %v1641 = vpop.xlane.xlu0 %1640
        %v1642 = vsub.f32 %v1638, %v1641
        %v1643 = vmul.f32 %v1642, 1.442695
        %v1644 = vpow.pop %v1643
        %v1645 = vsel %vm478, %v1644, 0.0
        %1646 = vadd.xlane.f32.xlu0 %v1645
        %v1647 = vpop.xlane.xlu0 %1646
        %v1648 = vrcp.pop %v1647
        %v1649 = vmul.f32 %v1644, %v1648
        %1650 = vrot.lane.b32.xlu0 %v397, 16
        %v1651 = vpop.permute.xlu0 %1650
        %v1654 = vsel %vm478, %v1649, 0
        %1656 = vmatprep.subr.mxu0 0.0
        %1657 = vmatpush1.msra.mxu0 0.0
        %1658 = vmatprep.subr.mxu0 0.0
        %1659 = vmatpush1.msra.mxu0 0.0
        %1660 = vmatprep.subr.mxu0 0.0
        %1661 = vmatpush1.msra.mxu0 0.0
        %1662 = vmatprep.subr.mxu0 0.0
        %1663 = vmatpush1.msra.mxu0 0.0
        %1664 = vmatprep.subr.mxu0 0.0
        %1665 = vmatpush1.msra.mxu0 0.0
        %1666 = vmatprep.subr.mxu0 0.0
        %1667 = vmatpush1.msra.mxu0 0.0
        %1668 = vmatprep.subr.mxu0 0.0
        %1669 = vmatpush1.msra.mxu0 0.0
        %1670 = vmatprep.subr.mxu0 0.0
        %1671 = vmatpush1.msra.mxu0 0.0
        %1672 = vmatprep.subr.mxu0 0.0
        %1673 = vmatpush1.msra.mxu0 0.0
        %1674 = vmatprep.subr.mxu0 0.0
        %1675 = vmatpush1.msra.mxu0 0.0
        %1676 = vmatprep.subr.mxu0 0.0
        %1677 = vmatpush1.msra.mxu0 0.0
        %1678 = vmatprep.subr.mxu0 0.0
        %1679 = vmatpush1.msra.mxu0 0.0
        %1680 = vmatprep.subr.mxu0 0.0
        %1681 = vmatpush1.msra.mxu0 0.0
        %1682 = vmatprep.subr.mxu0 0.0
        %1683 = vmatpush1.msra.mxu0 0.0
        %1684 = vmatprep.subr.mxu0 0.0
        %1685 = vmatpush1.msra.mxu0 0.0
        %1686 = vmatprep.subr.mxu0 0.0
        %1687 = vmatpush1.msra.mxu0 %v1651
        %1688 = vmatprep.subr.mxu0 0.0
        %1689 = vmatpush2.msra.mxu0 0.0
        %1690 = vmatprep.subr.mxu0 0.0
        %1691 = vmatpush2.msra.mxu0 0.0
        %1692 = vmatprep.subr.mxu0 0.0
        %1693 = vmatpush2.msra.mxu0 0.0
        %1694 = vmatprep.subr.mxu0 0.0
        %1695 = vmatpush2.msra.mxu0 0.0
        %1696 = vmatprep.subr.mxu0 0.0
        %1697 = vmatpush2.msra.mxu0 0.0
        %1698 = vmatprep.subr.mxu0 0.0
        %1699 = vmatpush2.msra.mxu0 0.0
        %1700 = vmatprep.subr.mxu0 0.0
        %1701 = vmatpush2.msra.mxu0 0.0
        %1702 = vmatprep.subr.mxu0 0.0
        %1703 = vmatpush2.msra.mxu0 0.0
        %1704 = vmatprep.subr.mxu0 0.0
        %1705 = vmatpush2.msra.mxu0 0.0
        %1706 = vmatprep.subr.mxu0 0.0
        %1707 = vmatpush2.msra.mxu0 0.0
        %1708 = vmatprep.subr.mxu0 0.0
        %1709 = vmatpush2.msra.mxu0 0.0
        %1710 = vmatprep.subr.mxu0 0.0
        %1711 = vmatpush2.msra.mxu0 0.0
        %1712 = vmatprep.subr.mxu0 0.0
        %1713 = vmatpush2.msra.mxu0 0.0
        %1714 = vmatprep.subr.mxu0 0.0
        %1715 = vmatpush2.msra.mxu0 0.0
        %1716 = vmatprep.subr.mxu0 0.0
        %1717 = vmatpush2.msra.mxu0 0.0
        %1718 = vmatprep.subr.mxu0 0.0
        %1719 = vmatpush2.msra.mxu0 0.0
        %1720 = vmatprep.mubr.f32.mxu0 0.0
        %1721 = vmatmul.mubr.f32.gmra.mxu0 %v1654
        %v1722 = vpop.f32.mrf.mxu0
        %v1723 = vadd.f32 0.0, %v1722
        %v1724 = vpop.f32.mrf.mxu0
        %1725 = vdwg.mxu0
        %1727 = vrot.lane.b32.xlu0 %v727, 16
        %v1728 = vpop.permute.xlu0 %1727
        %1731 = vrot.lane.b32.xlu0 %v893, 32
        %v1732 = vpop.permute.xlu0 %1731
        %1735 = vrot.lane.b32.xlu0 %v1059, 48
        %v1736 = vpop.permute.xlu0 %1735
        %1739 = vrot.lane.b32.xlu0 %v1225, 64
        %v1740 = vpop.permute.xlu0 %1739
        %1743 = vrot.lane.b32.xlu0 %v1391, 80
        %v1744 = vpop.permute.xlu0 %1743
        %1747 = vrot.lane.b32.xlu0 %v1557, 96
        %v1748 = vpop.permute.xlu0 %1747
        %1751 = vrot.lane.b32.xlu0 %v1723, 112
        %v1752 = vpop.permute.xlu0 %1751
        %v1754 = vsel %vm400, %v560, %v1728
        %v1755 = vsel %vm255, %v1754, %v1732
        %vm1756 = vcmask 392192
        %v1757 = vsel %vm1756, %v1755, %v1736
        %vm1758 = vcmask 523264
        %v1759 = vsel %vm1758, %v1757, %v1740
        %vm1760 = vcmask 654336
        %v1761 = vsel %vm1760, %v1759, %v1744
        %vm1762 = vcmask 785408
        %v1763 = vsel %vm1762, %v1761, %v1748
        %vm1764 = vcmask 916480
        %v1765 = vsel %vm1764, %v1763, %v1752
        %v1766 = vld [vmem:[#allocation7] sm:$0xff]
        %v1767 = vld [vmem:[#allocation7 + $0x8] sm:$0xff]
        %v1768 = vld [vmem:[#allocation7 + $0x10] sm:$0xff]
        %v1769 = vld [vmem:[#allocation7 + $0x18] sm:$0xff]
        %v1770 = vld [vmem:[#allocation7 + $0x20] sm:$0xff]
        %v1771 = vld [vmem:[#allocation7 + $0x28] sm:$0xff]
        %v1772 = vld [vmem:[#allocation7 + $0x30] sm:$0xff]
        %v1773 = vld [vmem:[#allocation7 + $0x38] sm:$0xff]
        %v1774 = vld [vmem:[#allocation7 + $0x40] sm:$0xff]
        %v1775 = vld [vmem:[#allocation7 + $0x48] sm:$0xff]
        %v1776 = vld [vmem:[#allocation7 + $0x50] sm:$0xff]
        %v1777 = vld [vmem:[#allocation7 + $0x58] sm:$0xff]
        %v1778 = vld [vmem:[#allocation7 + $0x60] sm:$0xff]
        %v1779 = vld [vmem:[#allocation7 + $0x68] sm:$0xff]
        %v1780 = vld [vmem:[#allocation7 + $0x70] sm:$0xff]
        %v1781 = vld [vmem:[#allocation7 + $0x78] sm:$0xff]
        %v1782 = vld [vmem:[%s3] sm:$0x1]
        %v1784 = vlaneseq
        %v1785 = vshrl.u32 %v1784, 7
        %v1786 = vsub.s32 0, %v1785
        %v1787 = vrot.slane %v1782, %v1786
        %1789 = vmatprep.subr.mxu0 0.0
        %1790 = vmatpush1.msra.mxu0 %v1781
        %1791 = vmatprep.subr.mxu0 0.0
        %1792 = vmatpush1.msra.mxu0 %v1780
        %1793 = vmatprep.subr.mxu0 0.0
        %1794 = vmatpush1.msra.mxu0 %v1779
        %1795 = vmatprep.subr.mxu0 0.0
        %1796 = vmatpush1.msra.mxu0 %v1778
        %1797 = vmatprep.subr.mxu0 0.0
        %1798 = vmatpush1.msra.mxu0 %v1777
        %1799 = vmatprep.subr.mxu0 0.0
        %1800 = vmatpush1.msra.mxu0 %v1776
        %1801 = vmatprep.subr.mxu0 0.0
        %1802 = vmatpush1.msra.mxu0 %v1775
        %1803 = vmatprep.subr.mxu0 0.0
        %1804 = vmatpush1.msra.mxu0 %v1774
        %1805 = vmatprep.subr.mxu0 0.0
        %1806 = vmatpush1.msra.mxu0 %v1773
        %1807 = vmatprep.subr.mxu0 0.0
        %1808 = vmatpush1.msra.mxu0 %v1772
        %1809 = vmatprep.subr.mxu0 0.0
        %1810 = vmatpush1.msra.mxu0 %v1771
        %1811 = vmatprep.subr.mxu0 0.0
        %1812 = vmatpush1.msra.mxu0 %v1770
        %1813 = vmatprep.subr.mxu0 0.0
        %1814 = vmatpush1.msra.mxu0 %v1769
        %1815 = vmatprep.subr.mxu0 0.0
        %1816 = vmatpush1.msra.mxu0 %v1768
        %1817 = vmatprep.subr.mxu0 0.0
        %1818 = vmatpush1.msra.mxu0 %v1767
        %1819 = vmatprep.subr.mxu0 0.0
        %1820 = vmatpush1.msra.mxu0 %v1766
        %1821 = vmatprep.subr.mxu0 0.0
        %1822 = vmatpush2.msra.mxu0 0.0
        %1823 = vmatprep.subr.mxu0 0.0
        %1824 = vmatpush2.msra.mxu0 0.0
        %1825 = vmatprep.subr.mxu0 0.0
        %1826 = vmatpush2.msra.mxu0 0.0
        %1827 = vmatprep.subr.mxu0 0.0
        %1828 = vmatpush2.msra.mxu0 0.0
        %1829 = vmatprep.subr.mxu0 0.0
        %1830 = vmatpush2.msra.mxu0 0.0
        %1831 = vmatprep.subr.mxu0 0.0
        %1832 = vmatpush2.msra.mxu0 0.0
        %1833 = vmatprep.subr.mxu0 0.0
        %1834 = vmatpush2.msra.mxu0 0.0
        %1835 = vmatprep.subr.mxu0 0.0
        %1836 = vmatpush2.msra.mxu0 0.0
        %1837 = vmatprep.subr.mxu0 0.0
        %1838 = vmatpush2.msra.mxu0 0.0
        %1839 = vmatprep.subr.mxu0 0.0
        %1840 = vmatpush2.msra.mxu0 0.0
        %1841 = vmatprep.subr.mxu0 0.0
        %1842 = vmatpush2.msra.mxu0 0.0
        %1843 = vmatprep.subr.mxu0 0.0
        %1844 = vmatpush2.msra.mxu0 0.0
        %1845 = vmatprep.subr.mxu0 0.0
        %1846 = vmatpush2.msra.mxu0 0.0
        %1847 = vmatprep.subr.mxu0 0.0
        %1848 = vmatpush2.msra.mxu0 0.0
        %1849 = vmatprep.subr.mxu0 0.0
        %1850 = vmatpush2.msra.mxu0 0.0
        %1851 = vmatprep.subr.mxu0 0.0
        %1852 = vmatpush2.msra.mxu0 0.0
        %1853 = vmatprep.mubr.f32.mxu0 0.0
        %1854 = vmatmul.mubr.f32.gmra.mxu0 %v1765
        %v1855 = vpop.f32.mrf.mxu0
        %v1856 = vadd.f32 %v1787, %v1855
        %v1857 = vpop.f32.mrf.mxu0
        %1858 = vdwg.mxu0
        %1859 = vst [vmem:[%s241] sm:$0xff] %v1856
        %s1860 = sand.u32 %s119, 1
        %s1861 = scalar_lea.sflag [#allocation4], %s1860
        %s1862 = sand.u32 %s119, 1
        %s1863 = smul.addr %s1862, 8
        %s1864 = scalar_lea.vmem [#allocation8], %s1863
        // Predicated region
        $region49: #{tpu_custom_call.1} parent=35 // pred_check
          %p1865 = pneg %p129
        $region50: #{tpu_custom_call.1} parent=35 // pred_check_branch
          %1867 = sbr.rel (%p1865) target = $region52
        $region51: #{tpu_custom_call.1} parent=35 // pred_region
          %s1869 = ssub.s32 128, 128
          %1870 = vsyncadd %s1861, %s1869
          %s1871 = smul.addr %s22, 128
          %s1872 = scalar_lea.hbm %s4, %s1871
          %s1874 = sshll.u32 %s1864, 4
          %s1875 = int_to_ptr.vmem [resolvable:$true] %s1874
          %1877 = dma.vmem_to_hbm [thread:$0]  %s1875, 128, %s1872, %s1861
        $region52: #{tpu_custom_call.1} parent=35 // pred_fallthru
          _
      $region36: #{tpu_custom_call.1} parent=5 // pred_fallthru
        _
      %p1878 = scmp.le.s32.totalorder 2, %s17
      // Predicated region
      $region53: #{tpu_custom_call.1} parent=5 // pred_check
        %p1879 = pneg %p1878
      $region54: #{tpu_custom_call.1} parent=5 // pred_check_branch
        %1881 = sbr.rel (%p1879) target = $region56
      $region55: #{tpu_custom_call.1} parent=5 // pred_region
        %s1882 = ssub.s32 %s17, 2
        // Predicated region
        $region57: #{tpu_custom_call.1} parent=55 // pred_check
          %p1883 = pneg %p135
        $region58: #{tpu_custom_call.1} parent=55 // pred_check_branch
          %1885 = sbr.rel (%p1883) target = $region60
        $region59: #{tpu_custom_call.1} parent=55 // pred_region
          %s1886 = sand.u32 %s120, 1
          %s1887 = scalar_lea.sflag [#allocation4], %s1886
          %s1888 = sand.u32 %s120, 1
          %s1889 = smul.addr %s1888, 8
          %s1890 = scalar_lea.vmem [#allocation8], %s1889
          %1891 = dma.done %s1887, 128
        $region60: #{tpu_custom_call.1} parent=55 // pred_fallthru
          _
      $region56: #{tpu_custom_call.1} parent=5 // pred_fallthru
        _
    $region6: #{tpu_custom_call.1} parent=1 // loop_footer
      %s21 = sadd.s32 1, %s17
    $region7: #{tpu_custom_call.1} parent=1 // loop_footer_branch
      %16 = sbr.rel target = $region3
    $region8: #{tpu_custom_call.1} parent=1 // loop_exit
      _
    %1892 = vsyncpa [#allocation3], 1
    %s1893 = scalar_lea.sflag [#allocation3], 1
    %1894 = vsyncpa %s1893, 1
    %1895 = vsyncpa [#allocation6], 1
    %1896 = vsyncpa [#allocation4], 1
    %s1897 = scalar_lea.sflag [#allocation4], 1
    %1898 = vsyncpa %s1897, 1

</llo_original>
